<compile_context>
chip_gen: v7x
topology: tpu7x:2x2x1
jax: 0.10.0
libtpu: 0.0.40
codegen_flags: <defaults>
</compile_context>

<pallas_src>
import functools
import math

import jax
import jax.numpy as jnp
from jax import lax
from jax.experimental import pallas as pl
from jax.experimental.pallas import tpu as pltpu

# ---------------------------------------------------------------------------
# Config (stand-in for `opt`)
# ---------------------------------------------------------------------------
B = 2            # batch
C_IN = 3         # opt.input_channel
IMG_H = 16       # opt.img_h
IMG_W = 32       # opt.img_w
C = 32           # opt.output_channel
HIDDEN = 32      # opt.hidden_size
T = 8            # opt.batch_max_length + 1
N_CLS = 16       # opt.n_cls
DOWN = 4         # extractor spatial downsampling
GH = GW = 8      # glyph patch size
FH, FW = IMG_H // DOWN, IMG_W // DOWN   # feature-map spatial dims (4, 8)
NPOS = FH * FW                           # flattened spatial positions (32)
BT = B * T                               # decoder rows (16)
STEM_IN = DOWN * DOWN * C_IN             # patchified stem input channels (48)
GLY = GH * GW                            # glyph pixels (64)

# packed head-weight column layout (lane-dense, exactly 128 columns)
COL_GP = 0                        # g_prime logits           [0, 16)
COL_G = N_CLS                     # g logits                 [16, 32)
COL_GLYPH = 2 * N_CLS             # glyph pixels             [32, 96)
COL_ZP = 2 * N_CLS + GLY          # fuse-gate part (gp path) [96, 112)
COL_ZH = COL_ZP + N_CLS           # fuse-gate part (g path)  [112, 128)
HEAD_W = COL_ZH + N_CLS           # 128
assert HEAD_W == 128

# ---- single packed weight slab layout (SLAB_R x 128, f32) ------------------
SLAB_C = 128
ROW_EXT1 = 0                      # w_ext1 (STEM_IN x C) @ cols [0, C)
ROW_MID = 48                      # w_ext2 / w_pam1 / w_pam2 / char_embed
ROW_POSQ = ROW_MID + N_CLS        # pos_query (T x C) @ cols [MID_C3, MID_C3+C)
ROW_HEAD = 80                     # packed head weight (C x 128)
ROW_BHEAD = ROW_HEAD + C          # packed head bias (1 x 128)
ROW_BIAS = ROW_BHEAD + 1          # stem/PAM biases packed along one row
SLAB_R = 120
MID_C0 = 0                        # w_ext2      cols
MID_C1 = C                        # w_pam1      cols
MID_C2 = C + HIDDEN               # w_pam2      cols
MID_C3 = 2 * C + HIDDEN           # char_embed / pos_query cols
assert MID_C3 + C <= SLAB_C
assert ROW_EXT1 + STEM_IN <= ROW_MID
assert ROW_MID + max(C, HIDDEN, N_CLS) <= ROW_HEAD
assert ROW_POSQ + T <= ROW_HEAD
assert ROW_BIAS + 1 <= SLAB_R

# packed output slab layout (BT x 128, f32)
OUT_PRED = 0                      # pred        [0, 16)
OUT_GLYPH = N_CLS                 # glyph       [16, 80)
OUT_IDS = N_CLS + GLY             # argmax id   [80, 81) (stored as f32)
OUT_TAIL = HEAD_W - N_CLS - GLY   # 48 tail lanes (id + pad)


# ---------------------------------------------------------------------------
# Single fused Pallas kernel
# ---------------------------------------------------------------------------
def _fused_kernel(xp_ref, text_ref, w_ref, out_ref):
    f32 = jnp.float32
    dot = functools.partial(jnp.dot, preferred_element_type=f32)

    # ---- static windows of the single packed weight slab (one DMA) ----
    w_ext1 = w_ref[ROW_EXT1:ROW_EXT1 + STEM_IN, 0:C]
    w_ext2 = w_ref[ROW_MID:ROW_MID + C, MID_C0:MID_C0 + C]
    w_pam1 = w_ref[ROW_MID:ROW_MID + C, MID_C1:MID_C1 + HIDDEN]
    w_pam2 = w_ref[ROW_MID:ROW_MID + HIDDEN, MID_C2:MID_C2 + C]
    char_embed = w_ref[ROW_MID:ROW_MID + N_CLS, MID_C3:MID_C3 + C]
    pos_query = w_ref[ROW_POSQ:ROW_POSQ + T, MID_C3:MID_C3 + C]
    w_head = w_ref[ROW_HEAD:ROW_HEAD + C, :]
    b_head = w_ref[ROW_BHEAD:ROW_BHEAD + 1, :]
    b_ext1 = w_ref[ROW_BIAS:ROW_BIAS + 1, 0:C]
    b_ext2 = w_ref[ROW_BIAS:ROW_BIAS + 1, C:2 * C]
    b_pam1 = w_ref[ROW_BIAS:ROW_BIAS + 1, 2 * C:2 * C + HIDDEN]
    b_pam2 = w_ref[ROW_BIAS:ROW_BIAS + 1, 2 * C + HIDDEN:2 * C + HIDDEN + C]

    # ---- Feature extraction stem (patchified input -> two pointwise convs) ----
    # TODO(synk): original extractor is EfficientNet/ResNet/RCNN (+ optional TPS).
    f1 = jnp.maximum(dot(xp_ref[...], w_ext1) + b_ext1, 0.0)
    vf = jnp.maximum(dot(f1, w_ext2) + b_ext2, 0.0)            # (B*NPOS, C)

    # ---- PositionAwareModule (pointwise mixer C -> hidden -> C) ----
    # TODO(synk): original PAM uses LSTMs over spatial rows.
    p1 = jnp.maximum(dot(vf, w_pam1) + b_pam1, 0.0)
    pf = dot(p1, w_pam2) + b_pam2                              # (B*NPOS, C)

    # ---- In-kernel char-embedding lookup (one-hot matmul, no XLA gather) ----
    tv = text_ref[...]                                         # (BT, 1) int32
    cls_iota = lax.broadcasted_iota(jnp.int32, (BT, N_CLS), 1)
    onehot = (cls_iota == tv).astype(f32)                      # (BT, N_CLS)
    qh = dot(onehot, char_embed)                               # (BT, C)

    # ---- Attention branches (position / hybrid), B is tiny & static ----
    scale = 1.0 / math.sqrt(C)
    dn = (((1,), (1,)), ((), ()))          # contract last axes -> no k.T transpose

    def _attend(q, k, v):
        s = lax.dot_general(q, k, dn, preferred_element_type=f32) * scale
        m = jnp.max(s, axis=-1, keepdims=True)
        e = jnp.exp(s - m)
        p = e * pl.reciprocal(jnp.sum(e, axis=-1, keepdims=True), approx=True)
        return dot(p, v)

    ctx_p, ctx_h = [], []
    for bi in range(B):                                   # static unroll (B=2)
        vf_b = vf[bi * NPOS:(bi + 1) * NPOS, :]
        pf_b = pf[bi * NPOS:(bi + 1) * NPOS, :]
        ctx_p.append(_attend(pos_query, pf_b, vf_b))                       # PAttnM
        # TODO(synk): original Hybrid branch is an autoregressive GRU decoder.
        ctx_h.append(_attend(qh[bi * T:(bi + 1) * T, :], vf_b, vf_b))      # Hybrid
    rows = jnp.concatenate(ctx_p + ctx_h, axis=0)         # (2*BT, C): [ctx_p; ctx_h]

    # ---- One lane-dense packed head matmul: (2*B*T, C) @ (C, 128) ----
    head = dot(rows, w_head) + b_head                     # (2*BT, 128)

    g_prime = head[:BT, COL_GP:COL_GP + N_CLS]            # ctx_p rows
    g = head[BT:, COL_G:COL_G + N_CLS]                    # ctx_h rows
    glyph = jnp.tanh(head[:BT, COL_GLYPH:COL_GLYPH + GLY])
    # Dynamically-fusing gate, pre-folded into the head weight columns:
    #   z = g @ w_fuse[:N] + g_prime @ w_fuse[N:] + b_fuse
    z = head[:BT, COL_ZP:COL_ZP + N_CLS] + head[BT:, COL_ZH:COL_ZH + N_CLS]
    gate = jax.nn.sigmoid(z)
    pred = gate * g + (1.0 - gate) * g_prime

    # ---- In-kernel argmax of g_prime (first-max tie-break, like argmax) ----
    mx = jnp.max(g_prime, axis=-1, keepdims=True)
    ids_i = jnp.min(jnp.where(g_prime == mx, cls_iota, N_CLS),
                    axis=-1, keepdims=True)               # (BT, 1) int32
    ids = ids_i.astype(f32)                               # exact small ints in f32

    # ---- Build the whole 128-lane row in registers; single unmasked store ----
    tail_lane = lax.broadcasted_iota(jnp.int32, (BT, OUT_TAIL), 1)
    tail = jnp.where(tail_lane == 0, ids, 0.0)            # ids at lane 0, zero pad
    out_ref[...] = jnp.concatenate([pred, glyph, tail], axis=1)   # (BT, 128)


# ---------------------------------------------------------------------------
# Parameters (deterministic, synthetic)
# ---------------------------------------------------------------------------
def init_params(key):
    ks = jax.random.split(key, 16)

    def w(k, shape, scale=0.05):
        return scale * jax.random.normal(k, shape, jnp.float32)

    return {
        # extractor stem (patchify + two pointwise convs)
        "w_ext1": w(ks[0], (STEM_IN, C)), "b_ext1": jnp.zeros((C,), jnp.float32),
        "w_ext2": w(ks[1], (C, C)),       "b_ext2": jnp.zeros((C,), jnp.float32),
        # PositionAwareModule
        "w_pam1": w(ks[2], (C, HIDDEN)),  "b_pam1": jnp.zeros((HIDDEN,), jnp.float32),
        "w_pam2": w(ks[3], (HIDDEN, C)),  "b_pam2": jnp.zeros((C,), jnp.float32),
        # Position attention branch
        "pos_query": w(ks[4], (T, C)),
        "w_cls_p": w(ks[5], (C, N_CLS)),  "b_cls_p": jnp.zeros((N_CLS,), jnp.float32),
        # Hybrid branch
        "char_embed": w(ks[6], (N_CLS, C)),
        "w_cls_h": w(ks[7], (C, N_CLS)),  "b_cls_h": jnp.zeros((N_CLS,), jnp.float32),
        # Glyph generator (tanh linear projection to an 8x8 patch)
        # TODO(synk): original Glyph.Generator is a deconv image generator.
        "w_glyph": w(ks[8], (C, GLY)),    "b_glyph": jnp.zeros((GLY,), jnp.float32),
        # Dynamic fuser
        "w_fuse": w(ks[9], (2 * N_CLS, N_CLS)), "b_fuse": jnp.zeros((N_CLS,), jnp.float32),
    }


def prepare_params(params):
    """One-time packing: fold heads/fuse-gate and pack ALL statics into one slab."""
    wf1 = params["w_fuse"][:N_CLS]   # multiplies g (hybrid logits)
    wf2 = params["w_fuse"][N_CLS:]   # multiplies g_prime (position logits)

    w_head = jnp.zeros((C, HEAD_W), jnp.float32)
    w_head = w_head.at[:, COL_GP:COL_GP + N_CLS].set(params["w_cls_p"])
    w_head = w_head.at[:, COL_G:COL_G + N_CLS].set(params["w_cls_h"])
    w_head = w_head.at[:, COL_GLYPH:COL_GLYPH + GLY].set(params["w_glyph"])
    w_head = w_head.at[:, COL_ZP:COL_ZP + N_CLS].set(params["w_cls_p"] @ wf2)
    w_head = w_head.at[:, COL_ZH:COL_ZH + N_CLS].set(params["w_cls_h"] @ wf1)

    b_head = jnp.zeros((HEAD_W,), jnp.float32)
    b_head = b_head.at[COL_GP:COL_GP + N_CLS].set(params["b_cls_p"])
    b_head = b_head.at[COL_G:COL_G + N_CLS].set(params["b_cls_h"])
    b_head = b_head.at[COL_GLYPH:COL_GLYPH + GLY].set(params["b_glyph"])
    b_head = b_head.at[COL_ZP:COL_ZP + N_CLS].set(params["b_cls_p"] @ wf2)
    b_head = b_head.at[COL_ZH:COL_ZH + N_CLS].set(params["b_cls_h"] @ wf1 + params["b_fuse"])

    slab = jnp.zeros((SLAB_R, SLAB_C), jnp.float32)
    slab = slab.at[ROW_EXT1:ROW_EXT1 + STEM_IN, 0:C].set(params["w_ext1"])
    slab = slab.at[ROW_MID:ROW_MID + C, MID_C0:MID_C0 + C].set(params["w_ext2"])
    slab = slab.at[ROW_MID:ROW_MID + C, MID_C1:MID_C1 + HIDDEN].set(params["w_pam1"])
    slab = slab.at[ROW_MID:ROW_MID + HIDDEN, MID_C2:MID_C2 + C].set(params["w_pam2"])
    slab = slab.at[ROW_MID:ROW_MID + N_CLS, MID_C3:MID_C3 + C].set(params["char_embed"])
    slab = slab.at[ROW_POSQ:ROW_POSQ + T, MID_C3:MID_C3 + C].set(params["pos_query"])
    slab = slab.at[ROW_HEAD:ROW_HEAD + C, :HEAD_W].set(w_head)
    slab = slab.at[ROW_BHEAD, :HEAD_W].set(b_head)
    slab = slab.at[ROW_BIAS, 0:C].set(params["b_ext1"])
    slab = slab.at[ROW_BIAS, C:2 * C].set(params["b_ext2"])
    slab = slab.at[ROW_BIAS, 2 * C:2 * C + HIDDEN].set(params["b_pam1"])
    slab = slab.at[ROW_BIAS, 2 * C + HIDDEN:2 * C + HIDDEN + C].set(params["b_pam2"])
    return {"w_slab": slab}


# ---------------------------------------------------------------------------
# Forward pass (mirrors model.forward's data-flow) — one pallas_call
# ---------------------------------------------------------------------------
def forward(prepared, x, text):
    # x: (B, C_IN, IMG_H, IMG_W) NCHW, text: (B, T) int32 ids in [0, N_CLS)
    # NCHW -> 4x4 patchify: free reshapes + ONE XLA transpose feeding the kernel.
    # TODO(synk): could be folded into the kernel input DMA via a gather index_map.
    xp = x.reshape(B, C_IN, FH, DOWN, FW, DOWN)
    xp = xp.transpose(0, 2, 4, 3, 5, 1).reshape(B * NPOS, STEM_IN)
    text_v = text.reshape(BT, 1).astype(jnp.int32)         # free reshape

    out = pl.pallas_call(
        _fused_kernel,
        out_shape=jax.ShapeDtypeStruct((BT, HEAD_W), jnp.float32),
        grid=(1,),
        in_specs=[
            pl.BlockSpec((B * NPOS, STEM_IN), lambda i: (0, 0)),   # xp (dynamic)
            pl.BlockSpec((BT, 1), lambda i: (0, 0)),               # text (dynamic)
            pl.BlockSpec((SLAB_R, SLAB_C), lambda i: (0, 0)),      # packed weights
        ],
        out_specs=pl.BlockSpec((BT, HEAD_W), lambda i: (0, 0)),
        compiler_params=pltpu.CompilerParams(dimension_semantics=("arbitrary",)),
    )(xp, text_v, prepared["w_slab"])

    pred = out[:, OUT_PRED:OUT_PRED + N_CLS].reshape(B, T, N_CLS)
    glyph = out[:, OUT_GLYPH:OUT_GLYPH + GLY].reshape(B, T, GH, GW)
    embedding_ids = out[:, OUT_IDS].astype(jnp.int32).reshape(B, T)

    # mirror: return (pred, glyph, embedding_ids)
    return pred, glyph, embedding_ids


# ---------------------------------------------------------------------------
if __name__ == "__main__":
    key = jax.random.PRNGKey(0)
    kx, kt = jax.random.split(key)
    x = jax.random.normal(kx, (B, C_IN, IMG_H, IMG_W), jnp.float32)
    text = jax.random.randint(kt, (B, T), 0, N_CLS, dtype=jnp.int32)

    params = init_params(jax.random.PRNGKey(42))
    prepared = prepare_params(params)          # one-time weight packing (not per call)

    fwd = jax.jit(forward)
    pred, glyph, embedding_ids = fwd(prepared, x, text)
    jax.block_until_ready((pred, glyph, embedding_ids))

    assert pred.shape == (B, T, N_CLS)
    assert glyph.shape == (B, T, GH, GW)
    assert embedding_ids.shape == (B, T)
    assert bool(jnp.all(embedding_ids >= 0)) and bool(jnp.all(embedding_ids < N_CLS))
    print("KERNEL_OK")
</pallas_src>

<mosaic_0001>
module attributes {stable_mosaic.version = 11 : i64} {
  func.func @_fused_kernel(%arg0: i32, %arg1: memref<64x48xf32, #tpu.memory_space<vmem>>, %arg2: memref<16x1xi32, #tpu.memory_space<vmem>>, %arg3: memref<120x128xf32, #tpu.memory_space<vmem>>, %arg4: memref<16x128xf32, #tpu.memory_space<vmem>>) attributes {dimension_semantics = [#tpu.dimension_semantics<arbitrary>], iteration_bounds = array<i64: 1>, scalar_prefetch = 0 : i64, scratch_operands = 0 : i64, tpu.core_type = #tpu.core_type<tc>, window_params = [{pipeline_mode = #tpu.pipeline_mode<synchronous>, transform_indices = @transform_0, window_bounds = array<i64: 64, 48>}, {pipeline_mode = #tpu.pipeline_mode<synchronous>, transform_indices = @transform_1, window_bounds = array<i64: 16, 1>}, {pipeline_mode = #tpu.pipeline_mode<synchronous>, transform_indices = @transform_2, window_bounds = array<i64: 120, 128>}, {pipeline_mode = #tpu.pipeline_mode<synchronous>, transform_indices = @transform_3, window_bounds = array<i64: 16, 128>}]} {
    %c0 = arith.constant 0 : index
    %c0_0 = arith.constant 0 : index
    %0 = vector.load %arg3[%c0, %c0_0] : memref<120x128xf32, #tpu.memory_space<vmem>>, vector<48x32xf32>
    %c48 = arith.constant 48 : index
    %c0_1 = arith.constant 0 : index
    %1 = vector.load %arg3[%c48, %c0_1] : memref<120x128xf32, #tpu.memory_space<vmem>>, vector<32x32xf32>
    %c48_2 = arith.constant 48 : index
    %c32 = arith.constant 32 : index
    %2 = vector.load %arg3[%c48_2, %c32] : memref<120x128xf32, #tpu.memory_space<vmem>>, vector<32x32xf32>
    %c48_3 = arith.constant 48 : index
    %c64 = arith.constant 64 : index
    %3 = vector.load %arg3[%c48_3, %c64] : memref<120x128xf32, #tpu.memory_space<vmem>>, vector<32x32xf32>
    %c48_4 = arith.constant 48 : index
    %c96 = arith.constant 96 : index
    %4 = vector.load %arg3[%c48_4, %c96] : memref<120x128xf32, #tpu.memory_space<vmem>>, vector<16x32xf32>
    %c64_5 = arith.constant 64 : index
    %c96_6 = arith.constant 96 : index
    %5 = vector.load %arg3[%c64_5, %c96_6] : memref<120x128xf32, #tpu.memory_space<vmem>>, vector<8x32xf32>
    %c80 = arith.constant 80 : index
    %c0_7 = arith.constant 0 : index
    %6 = vector.load %arg3[%c80, %c0_7] : memref<120x128xf32, #tpu.memory_space<vmem>>, vector<32x128xf32>
    %c112 = arith.constant 112 : index
    %c0_8 = arith.constant 0 : index
    %7 = vector.load %arg3[%c112, %c0_8] : memref<120x128xf32, #tpu.memory_space<vmem>>, vector<1x128xf32>
    %c113 = arith.constant 113 : index
    %c0_9 = arith.constant 0 : index
    %8 = vector.load %arg3[%c113, %c0_9] : memref<120x128xf32, #tpu.memory_space<vmem>>, vector<1x32xf32>
    %c113_10 = arith.constant 113 : index
    %c32_11 = arith.constant 32 : index
    %9 = vector.load %arg3[%c113_10, %c32_11] : memref<120x128xf32, #tpu.memory_space<vmem>>, vector<1x32xf32>
    %c113_12 = arith.constant 113 : index
    %c64_13 = arith.constant 64 : index
    %10 = vector.load %arg3[%c113_12, %c64_13] : memref<120x128xf32, #tpu.memory_space<vmem>>, vector<1x32xf32>
    %c113_14 = arith.constant 113 : index
    %c96_15 = arith.constant 96 : index
    %11 = vector.load %arg3[%c113_14, %c96_15] : memref<120x128xf32, #tpu.memory_space<vmem>>, vector<1x32xf32>
    %c0_16 = arith.constant 0 : index
    %c0_17 = arith.constant 0 : index
    %12 = vector.load %arg1[%c0_16, %c0_17] : memref<64x48xf32, #tpu.memory_space<vmem>>, vector<64x48xf32>
    %cst = arith.constant dense<0.000000e+00> : vector<64x32xf32>
    %13 = tpu.matmul %12, %0, %cst {dimension_numbers = #tpu.dot_dimension_numbers<[1], [0], [0], [1], [0, 0, 1, 1], [], []>} : vector<64x48xf32>, vector<48x32xf32>, vector<64x32xf32> -> vector<64x32xf32>
    %14 = vector.broadcast %8 : vector<1x32xf32> to vector<64x32xf32>
    %15 = arith.addf %13, %14 : vector<64x32xf32>
    %cst_18 = arith.constant 0.000000e+00 : f32
    %16 = vector.broadcast %cst_18 : f32 to vector<64x32xf32>
    %17 = arith.maximumf %15, %16 : vector<64x32xf32>
    %cst_19 = arith.constant dense<0.000000e+00> : vector<64x32xf32>
    %18 = tpu.matmul %17, %1, %cst_19 {dimension_numbers = #tpu.dot_dimension_numbers<[1], [0], [0], [1], [0, 0, 1, 1], [], []>} : vector<64x32xf32>, vector<32x32xf32>, vector<64x32xf32> -> vector<64x32xf32>
    %19 = vector.broadcast %9 : vector<1x32xf32> to vector<64x32xf32>
    %20 = arith.addf %18, %19 : vector<64x32xf32>
    %cst_20 = arith.constant 0.000000e+00 : f32
    %21 = vector.broadcast %cst_20 : f32 to vector<64x32xf32>
    %22 = arith.maximumf %20, %21 : vector<64x32xf32>
    %cst_21 = arith.constant dense<0.000000e+00> : vector<64x32xf32>
    %23 = tpu.matmul %22, %2, %cst_21 {dimension_numbers = #tpu.dot_dimension_numbers<[1], [0], [0], [1], [0, 0, 1, 1], [], []>} : vector<64x32xf32>, vector<32x32xf32>, vector<64x32xf32> -> vector<64x32xf32>
    %24 = vector.broadcast %10 : vector<1x32xf32> to vector<64x32xf32>
    %25 = arith.addf %23, %24 : vector<64x32xf32>
    %cst_22 = arith.constant 0.000000e+00 : f32
    %26 = vector.broadcast %cst_22 : f32 to vector<64x32xf32>
    %27 = arith.maximumf %25, %26 : vector<64x32xf32>
    %cst_23 = arith.constant dense<0.000000e+00> : vector<64x32xf32>
    %28 = tpu.matmul %27, %3, %cst_23 {dimension_numbers = #tpu.dot_dimension_numbers<[1], [0], [0], [1], [0, 0, 1, 1], [], []>} : vector<64x32xf32>, vector<32x32xf32>, vector<64x32xf32> -> vector<64x32xf32>
    %29 = vector.broadcast %11 : vector<1x32xf32> to vector<64x32xf32>
    %30 = arith.addf %28, %29 : vector<64x32xf32>
    %c0_24 = arith.constant 0 : index
    %c0_25 = arith.constant 0 : index
    %31 = vector.load %arg2[%c0_24, %c0_25] : memref<16x1xi32, #tpu.memory_space<vmem>>, vector<16x1xi32>
    %32 = tpu.iota {dimensions = array<i32: 1>} : vector<16x16xi32>
    %33 = vector.broadcast %31 : vector<16x1xi32> to vector<16x16xi32>
    %34 = arith.cmpi eq, %32, %33 : vector<16x16xi32>
    %35 = arith.extui %34 : vector<16x16xi1> to vector<16x16xi32>
    %36 = arith.sitofp %35 : vector<16x16xi32> to vector<16x16xf32>
    %cst_26 = arith.constant dense<0.000000e+00> : vector<16x32xf32>
    %37 = tpu.matmul %36, %4, %cst_26 {dimension_numbers = #tpu.dot_dimension_numbers<[1], [0], [0], [1], [0, 0, 1, 1], [], []>} : vector<16x16xf32>, vector<16x32xf32>, vector<16x32xf32> -> vector<16x32xf32>
    %38 = vector.extract_strided_slice %22 {offsets = [0, 0], sizes = [32, 32], strides = [1, 1]} : vector<64x32xf32> to vector<32x32xf32>
    %39 = vector.extract_strided_slice %30 {offsets = [0, 0], sizes = [32, 32], strides = [1, 1]} : vector<64x32xf32> to vector<32x32xf32>
    %cst_27 = arith.constant dense<0.000000e+00> : vector<8x32xf32>
    %40 = tpu.matmul %5, %39, %cst_27 {dimension_numbers = #tpu.dot_dimension_numbers<[1], [1], [0], [0], [0, 0, 1, 0], [], []>} : vector<8x32xf32>, vector<32x32xf32>, vector<8x32xf32> -> vector<8x32xf32>
    %cst_28 = arith.constant 0.176776692 : f32
    %41 = vector.broadcast %cst_28 : f32 to vector<8x32xf32>
    %42 = arith.mulf %40, %41 : vector<8x32xf32>
    %cst_29 = arith.constant dense<0xFF800000> : vector<8xf32>
    %43 = vector.multi_reduction <maximumf>, %42, %cst_29 [1] : vector<8x32xf32> to vector<8xf32>
    %44 = vector.shape_cast %43 : vector<8xf32> to vector<8x1xf32>
    %45 = vector.broadcast %44 : vector<8x1xf32> to vector<8x32xf32>
    %46 = arith.subf %42, %45 : vector<8x32xf32>
    %47 = math.exp %46 : vector<8x32xf32>
    %cst_30 = arith.constant dense<0.000000e+00> : vector<8xf32>
    %48 = vector.multi_reduction <add>, %47, %cst_30 [1] : vector<8x32xf32> to vector<8xf32>
    %49 = vector.shape_cast %48 : vector<8xf32> to vector<8x1xf32>
    %50 = tpu.reciprocal %49 {approx = true} : vector<8x1xf32> -> vector<8x1xf32>
    %51 = vector.broadcast %50 : vector<8x1xf32> to vector<8x32xf32>
    %52 = arith.mulf %47, %51 : vector<8x32xf32>
    %cst_31 = arith.constant dense<0.000000e+00> : vector<8x32xf32>
    %53 = tpu.matmul %52, %38, %cst_31 {dimension_numbers = #tpu.dot_dimension_numbers<[1], [0], [0], [1], [0, 0, 1, 1], [], []>} : vector<8x32xf32>, vector<32x32xf32>, vector<8x32xf32> -> vector<8x32xf32>
    %54 = vector.extract_strided_slice %37 {offsets = [0, 0], sizes = [8, 32], strides = [1, 1]} : vector<16x32xf32> to vector<8x32xf32>
    %cst_32 = arith.constant dense<0.000000e+00> : vector<8x32xf32>
    %55 = tpu.matmul %54, %38, %cst_32 {dimension_numbers = #tpu.dot_dimension_numbers<[1], [1], [0], [0], [0, 0, 1, 0], [], []>} : vector<8x32xf32>, vector<32x32xf32>, vector<8x32xf32> -> vector<8x32xf32>
    %cst_33 = arith.constant 0.176776692 : f32
    %56 = vector.broadcast %cst_33 : f32 to vector<8x32xf32>
    %57 = arith.mulf %55, %56 : vector<8x32xf32>
    %cst_34 = arith.constant dense<0xFF800000> : vector<8xf32>
    %58 = vector.multi_reduction <maximumf>, %57, %cst_34 [1] : vector<8x32xf32> to vector<8xf32>
    %59 = vector.shape_cast %58 : vector<8xf32> to vector<8x1xf32>
    %60 = vector.broadcast %59 : vector<8x1xf32> to vector<8x32xf32>
    %61 = arith.subf %57, %60 : vector<8x32xf32>
    %62 = math.exp %61 : vector<8x32xf32>
    %cst_35 = arith.constant dense<0.000000e+00> : vector<8xf32>
    %63 = vector.multi_reduction <add>, %62, %cst_35 [1] : vector<8x32xf32> to vector<8xf32>
    %64 = vector.shape_cast %63 : vector<8xf32> to vector<8x1xf32>
    %65 = tpu.reciprocal %64 {approx = true} : vector<8x1xf32> -> vector<8x1xf32>
    %66 = vector.broadcast %65 : vector<8x1xf32> to vector<8x32xf32>
    %67 = arith.mulf %62, %66 : vector<8x32xf32>
    %cst_36 = arith.constant dense<0.000000e+00> : vector<8x32xf32>
    %68 = tpu.matmul %67, %38, %cst_36 {dimension_numbers = #tpu.dot_dimension_numbers<[1], [0], [0], [1], [0, 0, 1, 1], [], []>} : vector<8x32xf32>, vector<32x32xf32>, vector<8x32xf32> -> vector<8x32xf32>
    %69 = vector.extract_strided_slice %22 {offsets = [32, 0], sizes = [32, 32], strides = [1, 1]} : vector<64x32xf32> to vector<32x32xf32>
    %70 = vector.extract_strided_slice %30 {offsets = [32, 0], sizes = [32, 32], strides = [1, 1]} : vector<64x32xf32> to vector<32x32xf32>
    %cst_37 = arith.constant dense<0.000000e+00> : vector<8x32xf32>
    %71 = tpu.matmul %5, %70, %cst_37 {dimension_numbers = #tpu.dot_dimension_numbers<[1], [1], [0], [0], [0, 0, 1, 0], [], []>} : vector<8x32xf32>, vector<32x32xf32>, vector<8x32xf32> -> vector<8x32xf32>
    %cst_38 = arith.constant 0.176776692 : f32
    %72 = vector.broadcast %cst_38 : f32 to vector<8x32xf32>
    %73 = arith.mulf %71, %72 : vector<8x32xf32>
    %cst_39 = arith.constant dense<0xFF800000> : vector<8xf32>
    %74 = vector.multi_reduction <maximumf>, %73, %cst_39 [1] : vector<8x32xf32> to vector<8xf32>
    %75 = vector.shape_cast %74 : vector<8xf32> to vector<8x1xf32>
    %76 = vector.broadcast %75 : vector<8x1xf32> to vector<8x32xf32>
    %77 = arith.subf %73, %76 : vector<8x32xf32>
    %78 = math.exp %77 : vector<8x32xf32>
    %cst_40 = arith.constant dense<0.000000e+00> : vector<8xf32>
    %79 = vector.multi_reduction <add>, %78, %cst_40 [1] : vector<8x32xf32> to vector<8xf32>
    %80 = vector.shape_cast %79 : vector<8xf32> to vector<8x1xf32>
    %81 = tpu.reciprocal %80 {approx = true} : vector<8x1xf32> -> vector<8x1xf32>
    %82 = vector.broadcast %81 : vector<8x1xf32> to vector<8x32xf32>
    %83 = arith.mulf %78, %82 : vector<8x32xf32>
    %cst_41 = arith.constant dense<0.000000e+00> : vector<8x32xf32>
    %84 = tpu.matmul %83, %69, %cst_41 {dimension_numbers = #tpu.dot_dimension_numbers<[1], [0], [0], [1], [0, 0, 1, 1], [], []>} : vector<8x32xf32>, vector<32x32xf32>, vector<8x32xf32> -> vector<8x32xf32>
    %85 = vector.extract_strided_slice %37 {offsets = [8, 0], sizes = [8, 32], strides = [1, 1]} : vector<16x32xf32> to vector<8x32xf32>
    %cst_42 = arith.constant dense<0.000000e+00> : vector<8x32xf32>
    %86 = tpu.matmul %85, %69, %cst_42 {dimension_numbers = #tpu.dot_dimension_numbers<[1], [1], [0], [0], [0, 0, 1, 0], [], []>} : vector<8x32xf32>, vector<32x32xf32>, vector<8x32xf32> -> vector<8x32xf32>
    %cst_43 = arith.constant 0.176776692 : f32
    %87 = vector.broadcast %cst_43 : f32 to vector<8x32xf32>
    %88 = arith.mulf %86, %87 : vector<8x32xf32>
    %cst_44 = arith.constant dense<0xFF800000> : vector<8xf32>
    %89 = vector.multi_reduction <maximumf>, %88, %cst_44 [1] : vector<8x32xf32> to vector<8xf32>
    %90 = vector.shape_cast %89 : vector<8xf32> to vector<8x1xf32>
    %91 = vector.broadcast %90 : vector<8x1xf32> to vector<8x32xf32>
    %92 = arith.subf %88, %91 : vector<8x32xf32>
    %93 = math.exp %92 : vector<8x32xf32>
    %cst_45 = arith.constant dense<0.000000e+00> : vector<8xf32>
    %94 = vector.multi_reduction <add>, %93, %cst_45 [1] : vector<8x32xf32> to vector<8xf32>
    %95 = vector.shape_cast %94 : vector<8xf32> to vector<8x1xf32>
    %96 = tpu.reciprocal %95 {approx = true} : vector<8x1xf32> -> vector<8x1xf32>
    %97 = vector.broadcast %96 : vector<8x1xf32> to vector<8x32xf32>
    %98 = arith.mulf %93, %97 : vector<8x32xf32>
    %cst_46 = arith.constant dense<0.000000e+00> : vector<8x32xf32>
    %99 = tpu.matmul %98, %69, %cst_46 {dimension_numbers = #tpu.dot_dimension_numbers<[1], [0], [0], [1], [0, 0, 1, 1], [], []>} : vector<8x32xf32>, vector<32x32xf32>, vector<8x32xf32> -> vector<8x32xf32>
    %100 = tpu.concatenate %53, %84, %68, %99 in 0 : vector<8x32xf32>, vector<8x32xf32>, vector<8x32xf32>, vector<8x32xf32> -> vector<32x32xf32>
    %cst_47 = arith.constant dense<0.000000e+00> : vector<32x128xf32>
    %101 = tpu.matmul %100, %6, %cst_47 {dimension_numbers = #tpu.dot_dimension_numbers<[1], [0], [0], [1], [0, 0, 1, 1], [], []>} : vector<32x32xf32>, vector<32x128xf32>, vector<32x128xf32> -> vector<32x128xf32>
    %102 = vector.broadcast %7 : vector<1x128xf32> to vector<32x128xf32>
    %103 = arith.addf %101, %102 : vector<32x128xf32>
    %104 = vector.extract_strided_slice %103 {offsets = [0, 0], sizes = [16, 16], strides = [1, 1]} : vector<32x128xf32> to vector<16x16xf32>
    %105 = vector.extract_strided_slice %103 {offsets = [16, 16], sizes = [16, 16], strides = [1, 1]} : vector<32x128xf32> to vector<16x16xf32>
    %106 = vector.extract_strided_slice %103 {offsets = [0, 32], sizes = [16, 64], strides = [1, 1]} : vector<32x128xf32> to vector<16x64xf32>
    %107 = math.tanh %106 : vector<16x64xf32>
    %108 = vector.extract_strided_slice %103 {offsets = [0, 96], sizes = [16, 16], strides = [1, 1]} : vector<32x128xf32> to vector<16x16xf32>
    %109 = vector.extract_strided_slice %103 {offsets = [16, 112], sizes = [16, 16], strides = [1, 1]} : vector<32x128xf32> to vector<16x16xf32>
    %110 = arith.addf %108, %109 : vector<16x16xf32>
    %111 = arith.negf %110 : vector<16x16xf32>
    %112 = math.exp %111 : vector<16x16xf32>
    %cst_48 = arith.constant 1.000000e+00 : f32
    %113 = vector.broadcast %cst_48 : f32 to vector<16x16xf32>
    %114 = arith.addf %113, %112 : vector<16x16xf32>
    %115 = arith.divf %113, %114 : vector<16x16xf32>
    %116 = arith.mulf %115, %105 : vector<16x16xf32>
    %cst_49 = arith.constant 1.000000e+00 : f32
    %117 = vector.broadcast %cst_49 : f32 to vector<16x16xf32>
    %118 = arith.subf %117, %115 : vector<16x16xf32>
    %119 = arith.mulf %118, %104 : vector<16x16xf32>
    %120 = arith.addf %116, %119 : vector<16x16xf32>
    %cst_50 = arith.constant dense<0xFF800000> : vector<16xf32>
    %121 = vector.multi_reduction <maximumf>, %104, %cst_50 [1] : vector<16x16xf32> to vector<16xf32>
    %122 = vector.shape_cast %121 : vector<16xf32> to vector<16x1xf32>
    %123 = vector.broadcast %122 : vector<16x1xf32> to vector<16x16xf32>
    %124 = arith.cmpf oeq, %104, %123 : vector<16x16xf32>
    %c16_i32 = arith.constant 16 : i32
    %125 = vector.broadcast %c16_i32 : i32 to vector<16x16xi32>
    %126 = arith.select %124, %32, %125 : vector<16x16xi1>, vector<16x16xi32>
    %cst_51 = arith.constant dense<2147483647> : vector<16xi32>
    %127 = vector.multi_reduction <minsi>, %126, %cst_51 [1] : vector<16x16xi32> to vector<16xi32>
    %128 = vector.shape_cast %127 : vector<16xi32> to vector<16x1xi32>
    %129 = arith.sitofp %128 : vector<16x1xi32> to vector<16x1xf32>
    %130 = tpu.iota {dimensions = array<i32: 1>} : vector<16x48xi32>
    %c0_i32 = arith.constant 0 : i32
    %131 = vector.broadcast %c0_i32 : i32 to vector<16x48xi32>
    %132 = arith.cmpi eq, %130, %131 : vector<16x48xi32>
    %cst_52 = arith.constant 0.000000e+00 : f32
    %133 = vector.shape_cast %129 : vector<16x1xf32> to vector<16x1xf32>
    %134 = vector.broadcast %133 : vector<16x1xf32> to vector<16x48xf32>
    %135 = vector.broadcast %cst_52 : f32 to vector<16x48xf32>
    %136 = arith.select %132, %134, %135 : vector<16x48xi1>, vector<16x48xf32>
    %137 = tpu.concatenate %120, %107, %136 in 1 : vector<16x16xf32>, vector<16x64xf32>, vector<16x48xf32> -> vector<16x128xf32>
    %c0_53 = arith.constant 0 : index
    %c0_54 = arith.constant 0 : index
    %138 = vector.load %arg4[%c0_53, %c0_54] : memref<16x128xf32, #tpu.memory_space<vmem>>, vector<16x128xf32>
    tpu.vector_store %arg4[%c0_53, %c0_54], %137 {strides = array<i32>} : memref<16x128xf32, #tpu.memory_space<vmem>>, vector<16x128xf32>,
    return
  }
  func.func @transform_0(%arg0: i32) -> (i32, i32) {
    %c0_i32 = arith.constant 0 : i32
    %c0_i32_0 = arith.constant 0 : i32
    %c0_i32_1 = arith.constant 0 : i32
    return %c0_i32, %c0_i32_0 : i32, i32
  }
  func.func @transform_1(%arg0: i32) -> (i32, i32) {
    %c0_i32 = arith.constant 0 : i32
    %c0_i32_0 = arith.constant 0 : i32
    %c0_i32_1 = arith.constant 0 : i32
    return %c0_i32, %c0_i32_0 : i32, i32
  }
  func.func @transform_2(%arg0: i32) -> (i32, i32) {
    %c0_i32 = arith.constant 0 : i32
    %c0_i32_0 = arith.constant 0 : i32
    %c0_i32_1 = arith.constant 0 : i32
    return %c0_i32, %c0_i32_0 : i32, i32
  }
  func.func @transform_3(%arg0: i32) -> (i32, i32) {
    %c0_i32 = arith.constant 0 : i32
    %c0_i32_0 = arith.constant 0 : i32
    %c0_i32_1 = arith.constant 0 : i32
    return %c0_i32, %c0_i32_0 : i32, i32
  }
}

</mosaic_0001>

<llo_original>
// kernel: forward.1
$region0: #{forward.1}
  #allocation0 [shape = 'u32[]', space=smem, size = 0x4, offset = 0x4, fixed_abs, tag = 'smem constant byte address 0x4 - core index']
  #allocation1 [shape = 'u32[144,128]{1,0:T(1,128)}', space=vmem, size = 0x12000, scoped, tag = 'internal scratch']
  %s0 = inlined_call_operand.vmem [shape: f32[64,48], index: 0, kind: input, shape index: {}]
  %s1 = inlined_call_operand.vmem [shape: s32[16,1], index: 1, kind: input, shape index: {}]
  %s2 = inlined_call_operand.vmem [shape: f32[120,128], index: 2, kind: input, shape index: {}]
  %s3 = inlined_call_operand.vmem [shape: f32[16,128], index: 3, kind: output, shape index: {}]
  %s4 = sld [smem:[#allocation0]]
  $region22: #{forward.1} parent=0
    _
  %s6 = ssub.s32 1, %s4
  %s7 = scalar_select 0, %s6, %s4
  // Predicated region
  $region2: #{forward.1} parent=0 // pred_check
    _
  $region3: #{forward.1} parent=0 // pred_check_branch
    %9 = sbr.rel (0) target = $region5
  $region4: #{forward.1} parent=0 // pred_region
    _
  $region5: #{forward.1} parent=0 // pred_fallthru
    _
  // Predicated region
  $region6: #{forward.1} parent=0 // pred_check
    _
  $region7: #{forward.1} parent=0 // pred_check_branch
    %11 = sbr.rel (0) target = $region9
  $region8: #{forward.1} parent=0 // pred_region
    _
  $region9: #{forward.1} parent=0 // pred_fallthru
    _
  // Predicated region
  $region10: #{forward.1} parent=0 // pred_check
    _
  $region11: #{forward.1} parent=0 // pred_check_branch
    %13 = sbr.rel (0) target = $region13
  $region12: #{forward.1} parent=0 // pred_region
    _
  $region13: #{forward.1} parent=0 // pred_fallthru
    _
  %v14 = vld [vmem:[%s2] sm:$0xff]
  %v15 = vld [vmem:[%s2 + $0x8] sm:$0xff]
  %v16 = vld [vmem:[%s2 + $0x10] sm:$0xff]
  %v17 = vld [vmem:[%s2 + $0x18] sm:$0xff]
  %v18 = vld [vmem:[%s2 + $0x20] sm:$0xff]
  %v19 = vld [vmem:[%s2 + $0x28] sm:$0xff]
  %v20 = vld [vmem:[%s2 + $0x30] sm:$0xff]
  %v21 = vld [vmem:[%s2 + $0x38] sm:$0xff]
  %v22 = vld [vmem:[%s2 + $0x40] sm:$0xff]
  %v23 = vld [vmem:[%s2 + $0x48] sm:$0xff]
  %v24 = vld [vmem:[%s2 + $0x50] sm:$0xff]
  %v25 = vld [vmem:[%s2 + $0x58] sm:$0xff]
  %v26 = vld [vmem:[%s2 + $0x60] sm:$0xff]
  %v27 = vld [vmem:[%s2 + $0x68] sm:$0xff]
  %v28 = vld [vmem:[%s2 + $0x70] sm:$0x1]
  %v29 = vld [vmem:[%s2 + $0x71] sm:$0x1]
  %v30 = vld [vmem:[%s0] sm:$0xff]
  %v31 = vld [vmem:[%s0 + $0x8] sm:$0xff]
  %v32 = vld [vmem:[%s0 + $0x10] sm:$0xff]
  %v33 = vld [vmem:[%s0 + $0x18] sm:$0xff]
  %v34 = vld [vmem:[%s0 + $0x20] sm:$0xff]
  %v35 = vld [vmem:[%s0 + $0x28] sm:$0xff]
  %v36 = vld [vmem:[%s0 + $0x30] sm:$0xff]
  %v37 = vld [vmem:[%s0 + $0x38] sm:$0xff]
  %v38 = vlaneseq
  %v39 = vshrl.u32 %v38, 7
  %v40 = vsub.s32 0, %v39
  %v41 = vrot.slane %v29, %v40
  %vm42 = vcmask 392192
  %v44 = vsel %vm42, %v30, 0
  %v47 = vsel %vm42, %v31, 0
  %v50 = vsel %vm42, %v32, 0
  %v53 = vsel %vm42, %v33, 0
  %v56 = vsel %vm42, %v34, 0
  %v59 = vsel %vm42, %v35, 0
  %v62 = vsel %vm42, %v36, 0
  %v65 = vsel %vm42, %v37, 0
  %67 = vmatprep.subr.mxu0 0.0
  %68 = vmatpush1.msra.mxu0 %v14
  %69 = vmatprep.subr.mxu0 0.0
  %70 = vmatpush1.msra.mxu0 %v15
  %71 = vmatprep.subr.mxu0 0.0
  %72 = vmatpush1.msra.mxu0 %v16
  %73 = vmatprep.subr.mxu0 0.0
  %74 = vmatpush1.msra.mxu0 %v17
  %75 = vmatprep.subr.mxu0 0.0
  %76 = vmatpush1.msra.mxu0 %v18
  %77 = vmatprep.subr.mxu0 0.0
  %78 = vmatpush1.msra.mxu0 %v19
  %79 = vmatprep.subr.mxu0 0.0
  %80 = vmatpush1.msra.mxu0 0.0
  %81 = vmatprep.subr.mxu0 0.0
  %82 = vmatpush1.msra.mxu0 0.0
  %83 = vmatprep.subr.mxu0 0.0
  %84 = vmatpush1.msra.mxu0 0.0
  %85 = vmatprep.subr.mxu0 0.0
  %86 = vmatpush1.msra.mxu0 0.0
  %87 = vmatprep.subr.mxu0 0.0
  %88 = vmatpush1.msra.mxu0 0.0
  %89 = vmatprep.subr.mxu0 0.0
  %90 = vmatpush1.msra.mxu0 0.0
  %91 = vmatprep.subr.mxu0 0.0
  %92 = vmatpush1.msra.mxu0 0.0
  %93 = vmatprep.subr.mxu0 0.0
  %94 = vmatpush1.msra.mxu0 0.0
  %95 = vmatprep.subr.mxu0 0.0
  %96 = vmatpush1.msra.mxu0 0.0
  %97 = vmatprep.subr.mxu0 0.0
  %98 = vmatpush1.msra.mxu0 0.0
  %99 = vmatprep.subr.mxu0 0.0
  %100 = vmatpush1.msra.mxu0 0.0
  %101 = vmatprep.subr.mxu0 0.0
  %102 = vmatpush1.msra.mxu0 0.0
  %103 = vmatprep.subr.mxu0 0.0
  %104 = vmatpush1.msra.mxu0 0.0
  %105 = vmatprep.subr.mxu0 0.0
  %106 = vmatpush1.msra.mxu0 0.0
  %107 = vmatprep.subr.mxu0 0.0
  %108 = vmatpush1.msra.mxu0 0.0
  %109 = vmatprep.subr.mxu0 0.0
  %110 = vmatpush1.msra.mxu0 0.0
  %111 = vmatprep.subr.mxu0 0.0
  %112 = vmatpush1.msra.mxu0 0.0
  %113 = vmatprep.subr.mxu0 0.0
  %114 = vmatpush1.msra.mxu0 0.0
  %115 = vmatprep.subr.mxu0 0.0
  %116 = vmatpush1.msra.mxu0 0.0
  %117 = vmatprep.subr.mxu0 0.0
  %118 = vmatpush1.msra.mxu0 0.0
  %119 = vmatprep.subr.mxu0 0.0
  %120 = vmatpush1.msra.mxu0 0.0
  %121 = vmatprep.subr.mxu0 0.0
  %122 = vmatpush1.msra.mxu0 0.0
  %123 = vmatprep.subr.mxu0 0.0
  %124 = vmatpush1.msra.mxu0 0.0
  %125 = vmatprep.subr.mxu0 0.0
  %126 = vmatpush1.msra.mxu0 0.0
  %127 = vmatprep.subr.mxu0 0.0
  %128 = vmatpush1.msra.mxu0 0.0
  %129 = vmatprep.subr.mxu0 0.0
  %130 = vmatpush1.msra.mxu0 0.0
  %131 = vmatprep.mubr.f32.mxu0 0.0
  %132 = vmatmul.mubr.f32.gmra.mrb[0].mxu0 %v44
  %v133 = vpop.f32.mrb[0].mxu0
  %v134 = vadd.f32 %v41, %v133
  %v135 = vpop.f32.mrb[0].mxu0
  %136 = vmatprep.mubr.f32.mxu0 0.0
  %137 = vmatmul.mubr.f32.gmra.mrb[0].mxu0 %v47
  %v138 = vpop.f32.mrb[0].mxu0
  %v139 = vadd.f32 %v41, %v138
  %v140 = vpop.f32.mrb[0].mxu0
  %141 = vmatprep.mubr.f32.mxu0 0.0
  %142 = vmatmul.mubr.f32.gmra.mrb[0].mxu0 %v50
  %v143 = vpop.f32.mrb[0].mxu0
  %v144 = vadd.f32 %v41, %v143
  %v145 = vpop.f32.mrb[0].mxu0
  %146 = vmatprep.mubr.f32.mxu0 0.0
  %147 = vmatmul.mubr.f32.gmra.mrb[0].mxu0 %v53
  %v148 = vpop.f32.mrb[0].mxu0
  %v149 = vadd.f32 %v41, %v148
  %v150 = vpop.f32.mrb[0].mxu0
  %151 = vmatprep.mubr.f32.mxu0 0.0
  %152 = vmatmul.mubr.f32.gmra.mrb[0].mxu0 %v56
  %v153 = vpop.f32.mrb[0].mxu0
  %v154 = vadd.f32 %v41, %v153
  %v155 = vpop.f32.mrb[0].mxu0
  %156 = vmatprep.mubr.f32.mxu0 0.0
  %157 = vmatmul.mubr.f32.gmra.mrb[0].mxu0 %v59
  %v158 = vpop.f32.mrb[0].mxu0
  %v159 = vadd.f32 %v41, %v158
  %v160 = vpop.f32.mrb[0].mxu0
  %161 = vmatprep.mubr.f32.mxu0 0.0
  %162 = vmatmul.mubr.f32.gmra.mrb[0].mxu0 %v62
  %v163 = vpop.f32.mrb[0].mxu0
  %v164 = vadd.f32 %v41, %v163
  %v165 = vpop.f32.mrb[0].mxu0
  %166 = vmatprep.mubr.f32.mxu0 0.0
  %167 = vmatmul.mubr.f32.gmra.mrb[0].mxu0 %v65
  %v168 = vpop.f32.mrb[0].mxu0
  %v169 = vadd.f32 %v41, %v168
  %v170 = vpop.f32.mrb[0].mxu0
  %171 = vdwg.mxu0
  %v172 = vmax.f32 %v134, 0.0
  %v173 = vmax.f32 %v139, 0.0
  %v174 = vmax.f32 %v144, 0.0
  %v175 = vmax.f32 %v149, 0.0
  %v176 = vmax.f32 %v154, 0.0
  %v177 = vmax.f32 %v159, 0.0
  %v178 = vmax.f32 %v164, 0.0
  %v179 = vmax.f32 %v169, 0.0
  %181 = vrot.lane.b32.xlu0 %v41, 96
  %v182 = vpop.permute.xlu0 %181
  %vm184 = vcmask 261120
  %v186 = vsel %vm184, %v172, 0
  %v189 = vsel %vm184, %v173, 0
  %v192 = vsel %vm184, %v174, 0
  %v195 = vsel %vm184, %v175, 0
  %v198 = vsel %vm184, %v176, 0
  %v201 = vsel %vm184, %v177, 0
  %v204 = vsel %vm184, %v178, 0
  %v207 = vsel %vm184, %v179, 0
  %209 = vmatprep.subr.mxu0 0.0
  %210 = vmatpush1.msra.mxu0 %v20
  %211 = vmatprep.subr.mxu0 0.0
  %212 = vmatpush1.msra.mxu0 %v21
  %213 = vmatprep.subr.mxu0 0.0
  %214 = vmatpush1.msra.mxu0 %v22
  %215 = vmatprep.subr.mxu0 0.0
  %216 = vmatpush1.msra.mxu0 %v23
  %217 = vmatprep.subr.mxu0 0.0
  %218 = vmatpush1.msra.mxu0 0.0
  %219 = vmatprep.subr.mxu0 0.0
  %220 = vmatpush1.msra.mxu0 0.0
  %221 = vmatprep.subr.mxu0 0.0
  %222 = vmatpush1.msra.mxu0 0.0
  %223 = vmatprep.subr.mxu0 0.0
  %224 = vmatpush1.msra.mxu0 0.0
  %225 = vmatprep.subr.mxu0 0.0
  %226 = vmatpush1.msra.mxu0 0.0
  %227 = vmatprep.subr.mxu0 0.0
  %228 = vmatpush1.msra.mxu0 0.0
  %229 = vmatprep.subr.mxu0 0.0
  %230 = vmatpush1.msra.mxu0 0.0
  %231 = vmatprep.subr.mxu0 0.0
  %232 = vmatpush1.msra.mxu0 0.0
  %233 = vmatprep.subr.mxu0 0.0
  %234 = vmatpush1.msra.mxu0 0.0
  %235 = vmatprep.subr.mxu0 0.0
  %236 = vmatpush1.msra.mxu0 0.0
  %237 = vmatprep.subr.mxu0 0.0
  %238 = vmatpush1.msra.mxu0 0.0
  %239 = vmatprep.subr.mxu0 0.0
  %240 = vmatpush1.msra.mxu0 0.0
  %241 = vmatprep.subr.mxu0 0.0
  %242 = vmatpush1.msra.mxu0 0.0
  %243 = vmatprep.subr.mxu0 0.0
  %244 = vmatpush1.msra.mxu0 0.0
  %245 = vmatprep.subr.mxu0 0.0
  %246 = vmatpush1.msra.mxu0 0.0
  %247 = vmatprep.subr.mxu0 0.0
  %248 = vmatpush1.msra.mxu0 0.0
  %249 = vmatprep.subr.mxu0 0.0
  %250 = vmatpush1.msra.mxu0 0.0
  %251 = vmatprep.subr.mxu0 0.0
  %252 = vmatpush1.msra.mxu0 0.0
  %253 = vmatprep.subr.mxu0 0.0
  %254 = vmatpush1.msra.mxu0 0.0
  %255 = vmatprep.subr.mxu0 0.0
  %256 = vmatpush1.msra.mxu0 0.0
  %257 = vmatprep.subr.mxu0 0.0
  %258 = vmatpush1.msra.mxu0 0.0
  %259 = vmatprep.subr.mxu0 0.0
  %260 = vmatpush1.msra.mxu0 0.0
  %261 = vmatprep.subr.mxu0 0.0
  %262 = vmatpush1.msra.mxu0 0.0
  %263 = vmatprep.subr.mxu0 0.0
  %264 = vmatpush1.msra.mxu0 0.0
  %265 = vmatprep.subr.mxu0 0.0
  %266 = vmatpush1.msra.mxu0 0.0
  %267 = vmatprep.subr.mxu0 0.0
  %268 = vmatpush1.msra.mxu0 0.0
  %269 = vmatprep.subr.mxu0 0.0
  %270 = vmatpush1.msra.mxu0 0.0
  %271 = vmatprep.subr.mxu0 0.0
  %272 = vmatpush1.msra.mxu0 0.0
  %273 = vmatprep.mubr.f32.mxu0 0.0
  %274 = vmatmul.mubr.f32.gmra.mrb[0].mxu0 %v186
  %v275 = vpop.f32.mrb[0].mxu0
  %v276 = vadd.f32 %v182, %v275
  %v277 = vpop.f32.mrb[0].mxu0
  %278 = vmatprep.mubr.f32.mxu0 0.0
  %279 = vmatmul.mubr.f32.gmra.mrb[0].mxu0 %v189
  %v280 = vpop.f32.mrb[0].mxu0
  %v281 = vadd.f32 %v182, %v280
  %v282 = vpop.f32.mrb[0].mxu0
  %283 = vmatprep.mubr.f32.mxu0 0.0
  %284 = vmatmul.mubr.f32.gmra.mrb[0].mxu0 %v192
  %v285 = vpop.f32.mrb[0].mxu0
  %v286 = vadd.f32 %v182, %v285
  %v287 = vpop.f32.mrb[0].mxu0
  %288 = vmatprep.mubr.f32.mxu0 0.0
  %289 = vmatmul.mubr.f32.gmra.mrb[0].mxu0 %v195
  %v290 = vpop.f32.mrb[0].mxu0
  %v291 = vadd.f32 %v182, %v290
  %v292 = vpop.f32.mrb[0].mxu0
  %293 = vmatprep.mubr.f32.mxu0 0.0
  %294 = vmatmul.mubr.f32.gmra.mrb[0].mxu0 %v198
  %v295 = vpop.f32.mrb[0].mxu0
  %v296 = vadd.f32 %v182, %v295
  %v297 = vpop.f32.mrb[0].mxu0
  %298 = vmatprep.mubr.f32.mxu0 0.0
  %299 = vmatmul.mubr.f32.gmra.mrb[0].mxu0 %v201
  %v300 = vpop.f32.mrb[0].mxu0
  %v301 = vadd.f32 %v182, %v300
  %v302 = vpop.f32.mrb[0].mxu0
  %303 = vmatprep.mubr.f32.mxu0 0.0
  %304 = vmatmul.mubr.f32.gmra.mrb[0].mxu0 %v204
  %v305 = vpop.f32.mrb[0].mxu0
  %v306 = vadd.f32 %v182, %v305
  %v307 = vpop.f32.mrb[0].mxu0
  %308 = vmatprep.mubr.f32.mxu0 0.0
  %309 = vmatmul.mubr.f32.gmra.mrb[0].mxu0 %v207
  %v310 = vpop.f32.mrb[0].mxu0
  %v311 = vadd.f32 %v182, %v310
  %v312 = vpop.f32.mrb[0].mxu0
  %313 = vdwg.mxu0
  %v314 = vmax.f32 %v276, 0.0
  %v315 = vmax.f32 %v281, 0.0
  %v316 = vmax.f32 %v286, 0.0
  %v317 = vmax.f32 %v291, 0.0
  %v318 = vmax.f32 %v296, 0.0
  %v319 = vmax.f32 %v301, 0.0
  %v320 = vmax.f32 %v306, 0.0
  %v321 = vmax.f32 %v311, 0.0
  %326 = vrot.lane.b32.xlu0 %v20, 96
  %v327 = vpop.permute.xlu0 %326
  %328 = vrot.lane.b32.xlu0 %v21, 96
  %v329 = vpop.permute.xlu0 %328
  %330 = vrot.lane.b32.xlu0 %v22, 96
  %v331 = vpop.permute.xlu0 %330
  %332 = vrot.lane.b32.xlu0 %v23, 96
  %v333 = vpop.permute.xlu0 %332
  %338 = vrot.lane.b32.xlu0 %v41, 64
  %v339 = vpop.permute.xlu0 %338
  %v342 = vsel %vm184, %v314, 0
  %v345 = vsel %vm184, %v315, 0
  %v348 = vsel %vm184, %v316, 0
  %v351 = vsel %vm184, %v317, 0
  %v354 = vsel %vm184, %v318, 0
  %v357 = vsel %vm184, %v319, 0
  %v360 = vsel %vm184, %v320, 0
  %v363 = vsel %vm184, %v321, 0
  %365 = vmatprep.subr.mxu0 0.0
  %366 = vmatpush1.msra.mxu0 %v327
  %367 = vmatprep.subr.mxu0 0.0
  %368 = vmatpush1.msra.mxu0 %v329
  %369 = vmatprep.subr.mxu0 0.0
  %370 = vmatpush1.msra.mxu0 %v331
  %371 = vmatprep.subr.mxu0 0.0
  %372 = vmatpush1.msra.mxu0 %v333
  %373 = vmatprep.subr.mxu0 0.0
  %374 = vmatpush1.msra.mxu0 0.0
  %375 = vmatprep.subr.mxu0 0.0
  %376 = vmatpush1.msra.mxu0 0.0
  %377 = vmatprep.subr.mxu0 0.0
  %378 = vmatpush1.msra.mxu0 0.0
  %379 = vmatprep.subr.mxu0 0.0
  %380 = vmatpush1.msra.mxu0 0.0
  %381 = vmatprep.subr.mxu0 0.0
  %382 = vmatpush1.msra.mxu0 0.0
  %383 = vmatprep.subr.mxu0 0.0
  %384 = vmatpush1.msra.mxu0 0.0
  %385 = vmatprep.subr.mxu0 0.0
  %386 = vmatpush1.msra.mxu0 0.0
  %387 = vmatprep.subr.mxu0 0.0
  %388 = vmatpush1.msra.mxu0 0.0
  %389 = vmatprep.subr.mxu0 0.0
  %390 = vmatpush1.msra.mxu0 0.0
  %391 = vmatprep.subr.mxu0 0.0
  %392 = vmatpush1.msra.mxu0 0.0
  %393 = vmatprep.subr.mxu0 0.0
  %394 = vmatpush1.msra.mxu0 0.0
  %395 = vmatprep.subr.mxu0 0.0
  %396 = vmatpush1.msra.mxu0 0.0
  %397 = vmatprep.subr.mxu0 0.0
  %398 = vmatpush1.msra.mxu0 0.0
  %399 = vmatprep.subr.mxu0 0.0
  %400 = vmatpush1.msra.mxu0 0.0
  %401 = vmatprep.subr.mxu0 0.0
  %402 = vmatpush1.msra.mxu0 0.0
  %403 = vmatprep.subr.mxu0 0.0
  %404 = vmatpush1.msra.mxu0 0.0
  %405 = vmatprep.subr.mxu0 0.0
  %406 = vmatpush1.msra.mxu0 0.0
  %407 = vmatprep.subr.mxu0 0.0
  %408 = vmatpush1.msra.mxu0 0.0
  %409 = vmatprep.subr.mxu0 0.0
  %410 = vmatpush1.msra.mxu0 0.0
  %411 = vmatprep.subr.mxu0 0.0
  %412 = vmatpush1.msra.mxu0 0.0
  %413 = vmatprep.subr.mxu0 0.0
  %414 = vmatpush1.msra.mxu0 0.0
  %415 = vmatprep.subr.mxu0 0.0
  %416 = vmatpush1.msra.mxu0 0.0
  %417 = vmatprep.subr.mxu0 0.0
  %418 = vmatpush1.msra.mxu0 0.0
  %419 = vmatprep.subr.mxu0 0.0
  %420 = vmatpush1.msra.mxu0 0.0
  %421 = vmatprep.subr.mxu0 0.0
  %422 = vmatpush1.msra.mxu0 0.0
  %423 = vmatprep.subr.mxu0 0.0
  %424 = vmatpush1.msra.mxu0 0.0
  %425 = vmatprep.subr.mxu0 0.0
  %426 = vmatpush1.msra.mxu0 0.0
  %427 = vmatprep.subr.mxu0 0.0
  %428 = vmatpush1.msra.mxu0 0.0
  %429 = vmatprep.mubr.f32.mxu0 0.0
  %430 = vmatmul.mubr.f32.gmra.mrb[0].mxu0 %v342
  %v431 = vpop.f32.mrb[0].mxu0
  %v432 = vadd.f32 %v339, %v431
  %v433 = vpop.f32.mrb[0].mxu0
  %434 = vmatprep.mubr.f32.mxu0 0.0
  %435 = vmatmul.mubr.f32.gmra.mrb[0].mxu0 %v345
  %v436 = vpop.f32.mrb[0].mxu0
  %v437 = vadd.f32 %v339, %v436
  %v438 = vpop.f32.mrb[0].mxu0
  %439 = vmatprep.mubr.f32.mxu0 0.0
  %440 = vmatmul.mubr.f32.gmra.mrb[0].mxu0 %v348
  %v441 = vpop.f32.mrb[0].mxu0
  %v442 = vadd.f32 %v339, %v441
  %v443 = vpop.f32.mrb[0].mxu0
  %444 = vmatprep.mubr.f32.mxu0 0.0
  %445 = vmatmul.mubr.f32.gmra.mrb[0].mxu0 %v351
  %v446 = vpop.f32.mrb[0].mxu0
  %v447 = vadd.f32 %v339, %v446
  %v448 = vpop.f32.mrb[0].mxu0
  %449 = vmatprep.mubr.f32.mxu0 0.0
  %450 = vmatmul.mubr.f32.gmra.mrb[0].mxu0 %v354
  %v451 = vpop.f32.mrb[0].mxu0
  %v452 = vadd.f32 %v339, %v451
  %v453 = vpop.f32.mrb[0].mxu0
  %454 = vmatprep.mubr.f32.mxu0 0.0
  %455 = vmatmul.mubr.f32.gmra.mrb[0].mxu0 %v357
  %v456 = vpop.f32.mrb[0].mxu0
  %v457 = vadd.f32 %v339, %v456
  %v458 = vpop.f32.mrb[0].mxu0
  %459 = vmatprep.mubr.f32.mxu0 0.0
  %460 = vmatmul.mubr.f32.gmra.mrb[0].mxu0 %v360
  %v461 = vpop.f32.mrb[0].mxu0
  %v462 = vadd.f32 %v339, %v461
  %v463 = vpop.f32.mrb[0].mxu0
  %464 = vmatprep.mubr.f32.mxu0 0.0
  %465 = vmatmul.mubr.f32.gmra.mrb[0].mxu0 %v363
  %v466 = vpop.f32.mrb[0].mxu0
  %v467 = vadd.f32 %v339, %v466
  %v468 = vpop.f32.mrb[0].mxu0
  %469 = vdwg.mxu0
  %v470 = vmax.f32 %v432, 0.0
  %v471 = vmax.f32 %v437, 0.0
  %v472 = vmax.f32 %v442, 0.0
  %v473 = vmax.f32 %v447, 0.0
  %v474 = vmax.f32 %v452, 0.0
  %v475 = vmax.f32 %v457, 0.0
  %v476 = vmax.f32 %v462, 0.0
  %v477 = vmax.f32 %v467, 0.0
  %478 = vrot.lane.b32.xlu0 %v20, 64
  %v479 = vpop.permute.xlu0 %478
  %480 = vrot.lane.b32.xlu0 %v21, 64
  %v481 = vpop.permute.xlu0 %480
  %482 = vrot.lane.b32.xlu0 %v22, 64
  %v483 = vpop.permute.xlu0 %482
  %484 = vrot.lane.b32.xlu0 %v23, 64
  %v485 = vpop.permute.xlu0 %484
  %490 = vrot.lane.b32.xlu0 %v41, 32
  %v491 = vpop.permute.xlu0 %490
  %v494 = vsel %vm184, %v470, 0
  %v497 = vsel %vm184, %v471, 0
  %v500 = vsel %vm184, %v472, 0
  %v503 = vsel %vm184, %v473, 0
  %v506 = vsel %vm184, %v474, 0
  %v509 = vsel %vm184, %v475, 0
  %v512 = vsel %vm184, %v476, 0
  %v515 = vsel %vm184, %v477, 0
  %517 = vmatprep.subr.mxu0 0.0
  %518 = vmatpush1.msra.mxu0 %v479
  %519 = vmatprep.subr.mxu0 0.0
  %520 = vmatpush1.msra.mxu0 %v481
  %521 = vmatprep.subr.mxu0 0.0
  %522 = vmatpush1.msra.mxu0 %v483
  %523 = vmatprep.subr.mxu0 0.0
  %524 = vmatpush1.msra.mxu0 %v485
  %525 = vmatprep.subr.mxu0 0.0
  %526 = vmatpush1.msra.mxu0 0.0
  %527 = vmatprep.subr.mxu0 0.0
  %528 = vmatpush1.msra.mxu0 0.0
  %529 = vmatprep.subr.mxu0 0.0
  %530 = vmatpush1.msra.mxu0 0.0
  %531 = vmatprep.subr.mxu0 0.0
  %532 = vmatpush1.msra.mxu0 0.0
  %533 = vmatprep.subr.mxu0 0.0
  %534 = vmatpush1.msra.mxu0 0.0
  %535 = vmatprep.subr.mxu0 0.0
  %536 = vmatpush1.msra.mxu0 0.0
  %537 = vmatprep.subr.mxu0 0.0
  %538 = vmatpush1.msra.mxu0 0.0
  %539 = vmatprep.subr.mxu0 0.0
  %540 = vmatpush1.msra.mxu0 0.0
  %541 = vmatprep.subr.mxu0 0.0
  %542 = vmatpush1.msra.mxu0 0.0
  %543 = vmatprep.subr.mxu0 0.0
  %544 = vmatpush1.msra.mxu0 0.0
  %545 = vmatprep.subr.mxu0 0.0
  %546 = vmatpush1.msra.mxu0 0.0
  %547 = vmatprep.subr.mxu0 0.0
  %548 = vmatpush1.msra.mxu0 0.0
  %549 = vmatprep.subr.mxu0 0.0
  %550 = vmatpush1.msra.mxu0 0.0
  %551 = vmatprep.subr.mxu0 0.0
  %552 = vmatpush1.msra.mxu0 0.0
  %553 = vmatprep.subr.mxu0 0.0
  %554 = vmatpush1.msra.mxu0 0.0
  %555 = vmatprep.subr.mxu0 0.0
  %556 = vmatpush1.msra.mxu0 0.0
  %557 = vmatprep.subr.mxu0 0.0
  %558 = vmatpush1.msra.mxu0 0.0
  %559 = vmatprep.subr.mxu0 0.0
  %560 = vmatpush1.msra.mxu0 0.0
  %561 = vmatprep.subr.mxu0 0.0
  %562 = vmatpush1.msra.mxu0 0.0
  %563 = vmatprep.subr.mxu0 0.0
  %564 = vmatpush1.msra.mxu0 0.0
  %565 = vmatprep.subr.mxu0 0.0
  %566 = vmatpush1.msra.mxu0 0.0
  %567 = vmatprep.subr.mxu0 0.0
  %568 = vmatpush1.msra.mxu0 0.0
  %569 = vmatprep.subr.mxu0 0.0
  %570 = vmatpush1.msra.mxu0 0.0
  %571 = vmatprep.subr.mxu0 0.0
  %572 = vmatpush1.msra.mxu0 0.0
  %573 = vmatprep.subr.mxu0 0.0
  %574 = vmatpush1.msra.mxu0 0.0
  %575 = vmatprep.subr.mxu0 0.0
  %576 = vmatpush1.msra.mxu0 0.0
  %577 = vmatprep.subr.mxu0 0.0
  %578 = vmatpush1.msra.mxu0 0.0
  %579 = vmatprep.subr.mxu0 0.0
  %580 = vmatpush1.msra.mxu0 0.0
  %581 = vmatprep.mubr.f32.mxu0 0.0
  %582 = vmatmul.mubr.f32.gmra.mrb[0].mxu0 %v494
  %v583 = vpop.f32.mrb[0].mxu0
  %v584 = vadd.f32 %v491, %v583
  %v585 = vpop.f32.mrb[0].mxu0
  %586 = vmatprep.mubr.f32.mxu0 0.0
  %587 = vmatmul.mubr.f32.gmra.mrb[0].mxu0 %v497
  %v588 = vpop.f32.mrb[0].mxu0
  %v589 = vadd.f32 %v491, %v588
  %v590 = vpop.f32.mrb[0].mxu0
  %591 = vmatprep.mubr.f32.mxu0 0.0
  %592 = vmatmul.mubr.f32.gmra.mrb[0].mxu0 %v500
  %v593 = vpop.f32.mrb[0].mxu0
  %v594 = vadd.f32 %v491, %v593
  %v595 = vpop.f32.mrb[0].mxu0
  %596 = vmatprep.mubr.f32.mxu0 0.0
  %597 = vmatmul.mubr.f32.gmra.mrb[0].mxu0 %v503
  %v598 = vpop.f32.mrb[0].mxu0
  %v599 = vadd.f32 %v491, %v598
  %v600 = vpop.f32.mrb[0].mxu0
  %601 = vmatprep.mubr.f32.mxu0 0.0
  %602 = vmatmul.mubr.f32.gmra.mrb[0].mxu0 %v506
  %v603 = vpop.f32.mrb[0].mxu0
  %v604 = vadd.f32 %v491, %v603
  %v605 = vpop.f32.mrb[0].mxu0
  %606 = vmatprep.mubr.f32.mxu0 0.0
  %607 = vmatmul.mubr.f32.gmra.mrb[0].mxu0 %v509
  %v608 = vpop.f32.mrb[0].mxu0
  %v609 = vadd.f32 %v491, %v608
  %v610 = vpop.f32.mrb[0].mxu0
  %611 = vmatprep.mubr.f32.mxu0 0.0
  %612 = vmatmul.mubr.f32.gmra.mrb[0].mxu0 %v512
  %v613 = vpop.f32.mrb[0].mxu0
  %v614 = vadd.f32 %v491, %v613
  %v615 = vpop.f32.mrb[0].mxu0
  %616 = vmatprep.mubr.f32.mxu0 0.0
  %617 = vmatmul.mubr.f32.gmra.mrb[0].mxu0 %v515
  %v618 = vpop.f32.mrb[0].mxu0
  %v619 = vadd.f32 %v491, %v618
  %v620 = vpop.f32.mrb[0].mxu0
  %621 = vdwg.mxu0
  %v622 = vld [vmem:[%s1] sm:$0xff]
  %v623 = vld [vmem:[%s1 + $0x8] sm:$0xff]
  %v624 = vlaneseq
  %v625 = vand.u32 %v624, 127
  %626 = vset.pattern.permute.xlu0 0
  %627 = vperm.xlu0 %626, %v622
  %v628 = vpop.permute.xlu0 %627
  %629 = vset.pattern.permute.xlu0 0
  %630 = vperm.xlu0 %629, %v623
  %v631 = vpop.permute.xlu0 %630
  %vm632 = vcmp.eq.s32.totalorder %v625, %v628
  %vm633 = vcmp.eq.s32.totalorder %v625, %v631
  %v634 = vsel %vm632, 1, 0
  %v635 = vsel %vm633, 1, 0
  %v636 = vcvt.s32.f32 %v634
  %v637 = vcvt.s32.f32 %v635
  %638 = vrot.lane.b32.xlu0 %v20, 32
  %v639 = vpop.permute.xlu0 %638
  %640 = vrot.lane.b32.xlu0 %v21, 32
  %v641 = vpop.permute.xlu0 %640
  %vm644 = vcmask 130048
  %v646 = vsel %vm644, %v636, 0
  %v649 = vsel %vm644, %v637, 0
  %651 = vmatprep.subr.mxu0 0.0
  %652 = vmatpush1.msra.mxu0 %v639
  %653 = vmatprep.subr.mxu0 0.0
  %654 = vmatpush1.msra.mxu0 %v641
  %655 = vmatprep.subr.mxu0 0.0
  %656 = vmatpush1.msra.mxu0 0.0
  %657 = vmatprep.subr.mxu0 0.0
  %658 = vmatpush1.msra.mxu0 0.0
  %659 = vmatprep.subr.mxu0 0.0
  %660 = vmatpush1.msra.mxu0 0.0
  %661 = vmatprep.subr.mxu0 0.0
  %662 = vmatpush1.msra.mxu0 0.0
  %663 = vmatprep.subr.mxu0 0.0
  %664 = vmatpush1.msra.mxu0 0.0
  %665 = vmatprep.subr.mxu0 0.0
  %666 = vmatpush1.msra.mxu0 0.0
  %667 = vmatprep.subr.mxu0 0.0
  %668 = vmatpush1.msra.mxu0 0.0
  %669 = vmatprep.subr.mxu0 0.0
  %670 = vmatpush1.msra.mxu0 0.0
  %671 = vmatprep.subr.mxu0 0.0
  %672 = vmatpush1.msra.mxu0 0.0
  %673 = vmatprep.subr.mxu0 0.0
  %674 = vmatpush1.msra.mxu0 0.0
  %675 = vmatprep.subr.mxu0 0.0
  %676 = vmatpush1.msra.mxu0 0.0
  %677 = vmatprep.subr.mxu0 0.0
  %678 = vmatpush1.msra.mxu0 0.0
  %679 = vmatprep.subr.mxu0 0.0
  %680 = vmatpush1.msra.mxu0 0.0
  %681 = vmatprep.subr.mxu0 0.0
  %682 = vmatpush1.msra.mxu0 0.0
  %683 = vmatprep.subr.mxu0 0.0
  %684 = vmatpush1.msra.mxu0 0.0
  %685 = vmatprep.subr.mxu0 0.0
  %686 = vmatpush1.msra.mxu0 0.0
  %687 = vmatprep.subr.mxu0 0.0
  %688 = vmatpush1.msra.mxu0 0.0
  %689 = vmatprep.subr.mxu0 0.0
  %690 = vmatpush1.msra.mxu0 0.0
  %691 = vmatprep.subr.mxu0 0.0
  %692 = vmatpush1.msra.mxu0 0.0
  %693 = vmatprep.subr.mxu0 0.0
  %694 = vmatpush1.msra.mxu0 0.0
  %695 = vmatprep.subr.mxu0 0.0
  %696 = vmatpush1.msra.mxu0 0.0
  %697 = vmatprep.subr.mxu0 0.0
  %698 = vmatpush1.msra.mxu0 0.0
  %699 = vmatprep.subr.mxu0 0.0
  %700 = vmatpush1.msra.mxu0 0.0
  %701 = vmatprep.subr.mxu0 0.0
  %702 = vmatpush1.msra.mxu0 0.0
  %703 = vmatprep.subr.mxu0 0.0
  %704 = vmatpush1.msra.mxu0 0.0
  %705 = vmatprep.subr.mxu0 0.0
  %706 = vmatpush1.msra.mxu0 0.0
  %707 = vmatprep.subr.mxu0 0.0
  %708 = vmatpush1.msra.mxu0 0.0
  %709 = vmatprep.subr.mxu0 0.0
  %710 = vmatpush1.msra.mxu0 0.0
  %711 = vmatprep.subr.mxu0 0.0
  %712 = vmatpush1.msra.mxu0 0.0
  %713 = vmatprep.subr.mxu0 0.0
  %714 = vmatpush1.msra.mxu0 0.0
  %715 = vmatprep.mubr.f32.mxu0 0.0
  %716 = vmatmul.mubr.f32.gmra.mrb[0].mxu0 %v646
  %v717 = vpop.f32.mrb[0].mxu0
  %v718 = vadd.f32 0.0, %v717
  %v719 = vpop.f32.mrb[0].mxu0
  %720 = vmatprep.mubr.f32.mxu0 0.0
  %721 = vmatmul.mubr.f32.gmra.mrb[0].mxu0 %v649
  %v722 = vpop.f32.mrb[0].mxu0
  %v723 = vadd.f32 0.0, %v722
  %v724 = vpop.f32.mrb[0].mxu0
  %725 = vdwg.mxu0
  %726 = vrot.lane.b32.xlu0 %v22, 32
  %v727 = vpop.permute.xlu0 %726
  %v728 = vsel %vm184, %v727, 0
  %v731 = vsel %vm184, %v584, 0
  %v734 = vsel %vm184, %v589, 0
  %v737 = vsel %vm184, %v594, 0
  %v740 = vsel %vm184, %v599, 0
  %742 = vmatprep.subr.mxu0 0.0
  %743 = vmatpush1.xpose.msra.mxu0 %v731
  %744 = vmatprep.subr.mxu0 0.0
  %745 = vmatpush1.xpose.msra.mxu0 %v734
  %746 = vmatprep.subr.mxu0 0.0
  %747 = vmatpush1.xpose.msra.mxu0 %v737
  %748 = vmatprep.subr.mxu0 0.0
  %749 = vmatpush1.xpose.msra.mxu0 %v740
  %750 = vmatprep.subr.mxu0 0.0
  %751 = vmatpush1.xpose.msra.mxu0 0.0
  %752 = vmatprep.subr.mxu0 0.0
  %753 = vmatpush1.xpose.msra.mxu0 0.0
  %754 = vmatprep.subr.mxu0 0.0
  %755 = vmatpush1.xpose.msra.mxu0 0.0
  %756 = vmatprep.subr.mxu0 0.0
  %757 = vmatpush1.xpose.msra.mxu0 0.0
  %758 = vmatprep.subr.mxu0 0.0
  %759 = vmatpush1.xpose.msra.mxu0 0.0
  %760 = vmatprep.subr.mxu0 0.0
  %761 = vmatpush1.xpose.msra.mxu0 0.0
  %762 = vmatprep.subr.mxu0 0.0
  %763 = vmatpush1.xpose.msra.mxu0 0.0
  %764 = vmatprep.subr.mxu0 0.0
  %765 = vmatpush1.xpose.msra.mxu0 0.0
  %766 = vmatprep.subr.mxu0 0.0
  %767 = vmatpush1.xpose.msra.mxu0 0.0
  %768 = vmatprep.subr.mxu0 0.0
  %769 = vmatpush1.xpose.msra.mxu0 0.0
  %770 = vmatprep.subr.mxu0 0.0
  %771 = vmatpush1.xpose.msra.mxu0 0.0
  %772 = vmatprep.subr.mxu0 0.0
  %773 = vmatpush1.xpose.msra.mxu0 0.0
  %774 = vmatprep.subr.mxu0 0.0
  %775 = vmatpush1.xpose.msra.mxu0 0.0
  %776 = vmatprep.subr.mxu0 0.0
  %777 = vmatpush1.xpose.msra.mxu0 0.0
  %778 = vmatprep.subr.mxu0 0.0
  %779 = vmatpush1.xpose.msra.mxu0 0.0
  %780 = vmatprep.subr.mxu0 0.0
  %781 = vmatpush1.xpose.msra.mxu0 0.0
  %782 = vmatprep.subr.mxu0 0.0
  %783 = vmatpush1.xpose.msra.mxu0 0.0
  %784 = vmatprep.subr.mxu0 0.0
  %785 = vmatpush1.xpose.msra.mxu0 0.0
  %786 = vmatprep.subr.mxu0 0.0
  %787 = vmatpush1.xpose.msra.mxu0 0.0
  %788 = vmatprep.subr.mxu0 0.0
  %789 = vmatpush1.xpose.msra.mxu0 0.0
  %790 = vmatprep.subr.mxu0 0.0
  %791 = vmatpush1.xpose.msra.mxu0 0.0
  %792 = vmatprep.subr.mxu0 0.0
  %793 = vmatpush1.xpose.msra.mxu0 0.0
  %794 = vmatprep.subr.mxu0 0.0
  %795 = vmatpush1.xpose.msra.mxu0 0.0
  %796 = vmatprep.subr.mxu0 0.0
  %797 = vmatpush1.xpose.msra.mxu0 0.0
  %798 = vmatprep.subr.mxu0 0.0
  %799 = vmatpush1.xpose.msra.mxu0 0.0
  %800 = vmatprep.subr.mxu0 0.0
  %801 = vmatpush1.xpose.msra.mxu0 0.0
  %802 = vmatprep.subr.mxu0 0.0
  %803 = vmatpush1.xpose.msra.mxu0 0.0
  %804 = vmatprep.subr.mxu0 0.0
  %805 = vmatpush1.xpose.msra.mxu0 0.0
  %806 = vmatprep.mubr.f32.mxu0 0.0
  %807 = vmatmul.mubr.f32.gmra.mrb[0].mxu0 %v728
  %v808 = vpop.f32.mrb[0].mxu0
  %v809 = vadd.f32 0.0, %v808
  %v810 = vpop.f32.mrb[0].mxu0
  %811 = vdwg.mxu0
  %v812 = vmul.f32 %v809, 0.17677669
  %v813 = vsel %vm184, %v812, -inf
  %814 = vmax.xlane.f32.xlu0 %v813
  %v815 = vpop.xlane.xlu0 %814
  %v816 = vsub.f32 %v812, %v815
  %v817 = vmul.f32 %v816, 1.442695
  %v818 = vpow.pop %v817
  %v819 = vsel %vm184, %v818, 0.0
  %820 = vadd.xlane.f32.xlu0 %v819
  %v821 = vpop.xlane.xlu0 %820
  %v822 = vrcp.pop %v821
  %v823 = vmul.f32 %v818, %v822
  %v825 = vsel %vm184, %v823, 0
  %827 = vmatprep.subr.mxu0 0.0
  %828 = vmatpush1.msra.mxu0 %v314
  %829 = vmatprep.subr.mxu0 0.0
  %830 = vmatpush1.msra.mxu0 %v315
  %831 = vmatprep.subr.mxu0 0.0
  %832 = vmatpush1.msra.mxu0 %v316
  %833 = vmatprep.subr.mxu0 0.0
  %834 = vmatpush1.msra.mxu0 %v317
  %835 = vmatprep.subr.mxu0 0.0
  %836 = vmatpush1.msra.mxu0 0.0
  %837 = vmatprep.subr.mxu0 0.0
  %838 = vmatpush1.msra.mxu0 0.0
  %839 = vmatprep.subr.mxu0 0.0
  %840 = vmatpush1.msra.mxu0 0.0
  %841 = vmatprep.subr.mxu0 0.0
  %842 = vmatpush1.msra.mxu0 0.0
  %843 = vmatprep.subr.mxu0 0.0
  %844 = vmatpush1.msra.mxu0 0.0
  %845 = vmatprep.subr.mxu0 0.0
  %846 = vmatpush1.msra.mxu0 0.0
  %847 = vmatprep.subr.mxu0 0.0
  %848 = vmatpush1.msra.mxu0 0.0
  %849 = vmatprep.subr.mxu0 0.0
  %850 = vmatpush1.msra.mxu0 0.0
  %851 = vmatprep.subr.mxu0 0.0
  %852 = vmatpush1.msra.mxu0 0.0
  %853 = vmatprep.subr.mxu0 0.0
  %854 = vmatpush1.msra.mxu0 0.0
  %855 = vmatprep.subr.mxu0 0.0
  %856 = vmatpush1.msra.mxu0 0.0
  %857 = vmatprep.subr.mxu0 0.0
  %858 = vmatpush1.msra.mxu0 0.0
  %859 = vmatprep.subr.mxu0 0.0
  %860 = vmatpush1.msra.mxu0 0.0
  %861 = vmatprep.subr.mxu0 0.0
  %862 = vmatpush1.msra.mxu0 0.0
  %863 = vmatprep.subr.mxu0 0.0
  %864 = vmatpush1.msra.mxu0 0.0
  %865 = vmatprep.subr.mxu0 0.0
  %866 = vmatpush1.msra.mxu0 0.0
  %867 = vmatprep.subr.mxu0 0.0
  %868 = vmatpush1.msra.mxu0 0.0
  %869 = vmatprep.subr.mxu0 0.0
  %870 = vmatpush1.msra.mxu0 0.0
  %871 = vmatprep.subr.mxu0 0.0
  %872 = vmatpush1.msra.mxu0 0.0
  %873 = vmatprep.subr.mxu0 0.0
  %874 = vmatpush1.msra.mxu0 0.0
  %875 = vmatprep.subr.mxu0 0.0
  %876 = vmatpush1.msra.mxu0 0.0
  %877 = vmatprep.subr.mxu0 0.0
  %878 = vmatpush1.msra.mxu0 0.0
  %879 = vmatprep.subr.mxu0 0.0
  %880 = vmatpush1.msra.mxu0 0.0
  %881 = vmatprep.subr.mxu0 0.0
  %882 = vmatpush1.msra.mxu0 0.0
  %883 = vmatprep.subr.mxu0 0.0
  %884 = vmatpush1.msra.mxu0 0.0
  %885 = vmatprep.subr.mxu0 0.0
  %886 = vmatpush1.msra.mxu0 0.0
  %887 = vmatprep.subr.mxu0 0.0
  %888 = vmatpush1.msra.mxu0 0.0
  %889 = vmatprep.subr.mxu0 0.0
  %890 = vmatpush1.msra.mxu0 0.0
  %891 = vmatprep.mubr.f32.mxu0 0.0
  %892 = vmatmul.mubr.f32.gmra.mrb[0].mxu0 %v825
  %v893 = vpop.f32.mrb[0].mxu0
  %v894 = vadd.f32 0.0, %v893
  %v895 = vpop.f32.mrb[0].mxu0
  %896 = vdwg.mxu0
  %v898 = vsel %vm184, %v718, 0
  %900 = vmatprep.subr.mxu0 0.0
  %901 = vmatpush1.xpose.msra.mxu0 %v342
  %902 = vmatprep.subr.mxu0 0.0
  %903 = vmatpush1.xpose.msra.mxu0 %v345
  %904 = vmatprep.subr.mxu0 0.0
  %905 = vmatpush1.xpose.msra.mxu0 %v348
  %906 = vmatprep.subr.mxu0 0.0
  %907 = vmatpush1.xpose.msra.mxu0 %v351
  %908 = vmatprep.subr.mxu0 0.0
  %909 = vmatpush1.xpose.msra.mxu0 0.0
  %910 = vmatprep.subr.mxu0 0.0
  %911 = vmatpush1.xpose.msra.mxu0 0.0
  %912 = vmatprep.subr.mxu0 0.0
  %913 = vmatpush1.xpose.msra.mxu0 0.0
  %914 = vmatprep.subr.mxu0 0.0
  %915 = vmatpush1.xpose.msra.mxu0 0.0
  %916 = vmatprep.subr.mxu0 0.0
  %917 = vmatpush1.xpose.msra.mxu0 0.0
  %918 = vmatprep.subr.mxu0 0.0
  %919 = vmatpush1.xpose.msra.mxu0 0.0
  %920 = vmatprep.subr.mxu0 0.0
  %921 = vmatpush1.xpose.msra.mxu0 0.0
  %922 = vmatprep.subr.mxu0 0.0
  %923 = vmatpush1.xpose.msra.mxu0 0.0
  %924 = vmatprep.subr.mxu0 0.0
  %925 = vmatpush1.xpose.msra.mxu0 0.0
  %926 = vmatprep.subr.mxu0 0.0
  %927 = vmatpush1.xpose.msra.mxu0 0.0
  %928 = vmatprep.subr.mxu0 0.0
  %929 = vmatpush1.xpose.msra.mxu0 0.0
  %930 = vmatprep.subr.mxu0 0.0
  %931 = vmatpush1.xpose.msra.mxu0 0.0
  %932 = vmatprep.subr.mxu0 0.0
  %933 = vmatpush1.xpose.msra.mxu0 0.0
  %934 = vmatprep.subr.mxu0 0.0
  %935 = vmatpush1.xpose.msra.mxu0 0.0
  %936 = vmatprep.subr.mxu0 0.0
  %937 = vmatpush1.xpose.msra.mxu0 0.0
  %938 = vmatprep.subr.mxu0 0.0
  %939 = vmatpush1.xpose.msra.mxu0 0.0
  %940 = vmatprep.subr.mxu0 0.0
  %941 = vmatpush1.xpose.msra.mxu0 0.0
  %942 = vmatprep.subr.mxu0 0.0
  %943 = vmatpush1.xpose.msra.mxu0 0.0
  %944 = vmatprep.subr.mxu0 0.0
  %945 = vmatpush1.xpose.msra.mxu0 0.0
  %946 = vmatprep.subr.mxu0 0.0
  %947 = vmatpush1.xpose.msra.mxu0 0.0
  %948 = vmatprep.subr.mxu0 0.0
  %949 = vmatpush1.xpose.msra.mxu0 0.0
  %950 = vmatprep.subr.mxu0 0.0
  %951 = vmatpush1.xpose.msra.mxu0 0.0
  %952 = vmatprep.subr.mxu0 0.0
  %953 = vmatpush1.xpose.msra.mxu0 0.0
  %954 = vmatprep.subr.mxu0 0.0
  %955 = vmatpush1.xpose.msra.mxu0 0.0
  %956 = vmatprep.subr.mxu0 0.0
  %957 = vmatpush1.xpose.msra.mxu0 0.0
  %958 = vmatprep.subr.mxu0 0.0
  %959 = vmatpush1.xpose.msra.mxu0 0.0
  %960 = vmatprep.subr.mxu0 0.0
  %961 = vmatpush1.xpose.msra.mxu0 0.0
  %962 = vmatprep.subr.mxu0 0.0
  %963 = vmatpush1.xpose.msra.mxu0 0.0
  %964 = vmatprep.mubr.f32.mxu0 0.0
  %965 = vmatmul.mubr.f32.gmra.mrb[0].mxu0 %v898
  %v966 = vpop.f32.mrb[0].mxu0
  %v967 = vadd.f32 0.0, %v966
  %v968 = vpop.f32.mrb[0].mxu0
  %969 = vdwg.mxu0
  %v970 = vmul.f32 %v967, 0.17677669
  %v971 = vsel %vm184, %v970, -inf
  %972 = vmax.xlane.f32.xlu0 %v971
  %v973 = vpop.xlane.xlu0 %972
  %v974 = vsub.f32 %v970, %v973
  %v975 = vmul.f32 %v974, 1.442695
  %v976 = vpow.pop %v975
  %v977 = vsel %vm184, %v976, 0.0
  %978 = vadd.xlane.f32.xlu0 %v977
  %v979 = vpop.xlane.xlu0 %978
  %v980 = vrcp.pop %v979
  %v981 = vmul.f32 %v976, %v980
  %v983 = vsel %vm184, %v981, 0
  %985 = vmatprep.subr.mxu0 0.0
  %986 = vmatpush1.msra.mxu0 %v314
  %987 = vmatprep.subr.mxu0 0.0
  %988 = vmatpush1.msra.mxu0 %v315
  %989 = vmatprep.subr.mxu0 0.0
  %990 = vmatpush1.msra.mxu0 %v316
  %991 = vmatprep.subr.mxu0 0.0
  %992 = vmatpush1.msra.mxu0 %v317
  %993 = vmatprep.subr.mxu0 0.0
  %994 = vmatpush1.msra.mxu0 0.0
  %995 = vmatprep.subr.mxu0 0.0
  %996 = vmatpush1.msra.mxu0 0.0
  %997 = vmatprep.subr.mxu0 0.0
  %998 = vmatpush1.msra.mxu0 0.0
  %999 = vmatprep.subr.mxu0 0.0
  %1000 = vmatpush1.msra.mxu0 0.0
  %1001 = vmatprep.subr.mxu0 0.0
  %1002 = vmatpush1.msra.mxu0 0.0
  %1003 = vmatprep.subr.mxu0 0.0
  %1004 = vmatpush1.msra.mxu0 0.0
  %1005 = vmatprep.subr.mxu0 0.0
  %1006 = vmatpush1.msra.mxu0 0.0
  %1007 = vmatprep.subr.mxu0 0.0
  %1008 = vmatpush1.msra.mxu0 0.0
  %1009 = vmatprep.subr.mxu0 0.0
  %1010 = vmatpush1.msra.mxu0 0.0
  %1011 = vmatprep.subr.mxu0 0.0
  %1012 = vmatpush1.msra.mxu0 0.0
  %1013 = vmatprep.subr.mxu0 0.0
  %1014 = vmatpush1.msra.mxu0 0.0
  %1015 = vmatprep.subr.mxu0 0.0
  %1016 = vmatpush1.msra.mxu0 0.0
  %1017 = vmatprep.subr.mxu0 0.0
  %1018 = vmatpush1.msra.mxu0 0.0
  %1019 = vmatprep.subr.mxu0 0.0
  %1020 = vmatpush1.msra.mxu0 0.0
  %1021 = vmatprep.subr.mxu0 0.0
  %1022 = vmatpush1.msra.mxu0 0.0
  %1023 = vmatprep.subr.mxu0 0.0
  %1024 = vmatpush1.msra.mxu0 0.0
  %1025 = vmatprep.subr.mxu0 0.0
  %1026 = vmatpush1.msra.mxu0 0.0
  %1027 = vmatprep.subr.mxu0 0.0
  %1028 = vmatpush1.msra.mxu0 0.0
  %1029 = vmatprep.subr.mxu0 0.0
  %1030 = vmatpush1.msra.mxu0 0.0
  %1031 = vmatprep.subr.mxu0 0.0
  %1032 = vmatpush1.msra.mxu0 0.0
  %1033 = vmatprep.subr.mxu0 0.0
  %1034 = vmatpush1.msra.mxu0 0.0
  %1035 = vmatprep.subr.mxu0 0.0
  %1036 = vmatpush1.msra.mxu0 0.0
  %1037 = vmatprep.subr.mxu0 0.0
  %1038 = vmatpush1.msra.mxu0 0.0
  %1039 = vmatprep.subr.mxu0 0.0
  %1040 = vmatpush1.msra.mxu0 0.0
  %1041 = vmatprep.subr.mxu0 0.0
  %1042 = vmatpush1.msra.mxu0 0.0
  %1043 = vmatprep.subr.mxu0 0.0
  %1044 = vmatpush1.msra.mxu0 0.0
  %1045 = vmatprep.subr.mxu0 0.0
  %1046 = vmatpush1.msra.mxu0 0.0
  %1047 = vmatprep.subr.mxu0 0.0
  %1048 = vmatpush1.msra.mxu0 0.0
  %1049 = vmatprep.mubr.f32.mxu0 0.0
  %1050 = vmatmul.mubr.f32.gmra.mrb[0].mxu0 %v983
  %v1051 = vpop.f32.mrb[0].mxu0
  %v1052 = vadd.f32 0.0, %v1051
  %v1053 = vpop.f32.mrb[0].mxu0
  %1054 = vdwg.mxu0
  %v1056 = vsel %vm184, %v604, 0
  %v1059 = vsel %vm184, %v609, 0
  %v1062 = vsel %vm184, %v614, 0
  %v1065 = vsel %vm184, %v619, 0
  %1067 = vmatprep.subr.mxu0 0.0
  %1068 = vmatpush1.xpose.msra.mxu0 %v1056
  %1069 = vmatprep.subr.mxu0 0.0
  %1070 = vmatpush1.xpose.msra.mxu0 %v1059
  %1071 = vmatprep.subr.mxu0 0.0
  %1072 = vmatpush1.xpose.msra.mxu0 %v1062
  %1073 = vmatprep.subr.mxu0 0.0
  %1074 = vmatpush1.xpose.msra.mxu0 %v1065
  %1075 = vmatprep.subr.mxu0 0.0
  %1076 = vmatpush1.xpose.msra.mxu0 0.0
  %1077 = vmatprep.subr.mxu0 0.0
  %1078 = vmatpush1.xpose.msra.mxu0 0.0
  %1079 = vmatprep.subr.mxu0 0.0
  %1080 = vmatpush1.xpose.msra.mxu0 0.0
  %1081 = vmatprep.subr.mxu0 0.0
  %1082 = vmatpush1.xpose.msra.mxu0 0.0
  %1083 = vmatprep.subr.mxu0 0.0
  %1084 = vmatpush1.xpose.msra.mxu0 0.0
  %1085 = vmatprep.subr.mxu0 0.0
  %1086 = vmatpush1.xpose.msra.mxu0 0.0
  %1087 = vmatprep.subr.mxu0 0.0
  %1088 = vmatpush1.xpose.msra.mxu0 0.0
  %1089 = vmatprep.subr.mxu0 0.0
  %1090 = vmatpush1.xpose.msra.mxu0 0.0
  %1091 = vmatprep.subr.mxu0 0.0
  %1092 = vmatpush1.xpose.msra.mxu0 0.0
  %1093 = vmatprep.subr.mxu0 0.0
  %1094 = vmatpush1.xpose.msra.mxu0 0.0
  %1095 = vmatprep.subr.mxu0 0.0
  %1096 = vmatpush1.xpose.msra.mxu0 0.0
  %1097 = vmatprep.subr.mxu0 0.0
  %1098 = vmatpush1.xpose.msra.mxu0 0.0
  %1099 = vmatprep.subr.mxu0 0.0
  %1100 = vmatpush1.xpose.msra.mxu0 0.0
  %1101 = vmatprep.subr.mxu0 0.0
  %1102 = vmatpush1.xpose.msra.mxu0 0.0
  %1103 = vmatprep.subr.mxu0 0.0
  %1104 = vmatpush1.xpose.msra.mxu0 0.0
  %1105 = vmatprep.subr.mxu0 0.0
  %1106 = vmatpush1.xpose.msra.mxu0 0.0
  %1107 = vmatprep.subr.mxu0 0.0
  %1108 = vmatpush1.xpose.msra.mxu0 0.0
  %1109 = vmatprep.subr.mxu0 0.0
  %1110 = vmatpush1.xpose.msra.mxu0 0.0
  %1111 = vmatprep.subr.mxu0 0.0
  %1112 = vmatpush1.xpose.msra.mxu0 0.0
  %1113 = vmatprep.subr.mxu0 0.0
  %1114 = vmatpush1.xpose.msra.mxu0 0.0
  %1115 = vmatprep.subr.mxu0 0.0
  %1116 = vmatpush1.xpose.msra.mxu0 0.0
  %1117 = vmatprep.subr.mxu0 0.0
  %1118 = vmatpush1.xpose.msra.mxu0 0.0
  %1119 = vmatprep.subr.mxu0 0.0
  %1120 = vmatpush1.xpose.msra.mxu0 0.0
  %1121 = vmatprep.subr.mxu0 0.0
  %1122 = vmatpush1.xpose.msra.mxu0 0.0
  %1123 = vmatprep.subr.mxu0 0.0
  %1124 = vmatpush1.xpose.msra.mxu0 0.0
  %1125 = vmatprep.subr.mxu0 0.0
  %1126 = vmatpush1.xpose.msra.mxu0 0.0
  %1127 = vmatprep.subr.mxu0 0.0
  %1128 = vmatpush1.xpose.msra.mxu0 0.0
  %1129 = vmatprep.subr.mxu0 0.0
  %1130 = vmatpush1.xpose.msra.mxu0 0.0
  %1131 = vmatprep.mubr.f32.mxu0 0.0
  %1132 = vmatmul.mubr.f32.gmra.mrb[0].mxu0 %v728
  %v1133 = vpop.f32.mrb[0].mxu0
  %v1134 = vadd.f32 0.0, %v1133
  %v1135 = vpop.f32.mrb[0].mxu0
  %1136 = vdwg.mxu0
  %v1137 = vmul.f32 %v1134, 0.17677669
  %v1138 = vsel %vm184, %v1137, -inf
  %1139 = vmax.xlane.f32.xlu0 %v1138
  %v1140 = vpop.xlane.xlu0 %1139
  %v1141 = vsub.f32 %v1137, %v1140
  %v1142 = vmul.f32 %v1141, 1.442695
  %v1143 = vpow.pop %v1142
  %v1144 = vsel %vm184, %v1143, 0.0
  %1145 = vadd.xlane.f32.xlu0 %v1144
  %v1146 = vpop.xlane.xlu0 %1145
  %v1147 = vrcp.pop %v1146
  %v1148 = vmul.f32 %v1143, %v1147
  %v1150 = vsel %vm184, %v1148, 0
  %1152 = vmatprep.subr.mxu0 0.0
  %1153 = vmatpush1.msra.mxu0 %v318
  %1154 = vmatprep.subr.mxu0 0.0
  %1155 = vmatpush1.msra.mxu0 %v319
  %1156 = vmatprep.subr.mxu0 0.0
  %1157 = vmatpush1.msra.mxu0 %v320
  %1158 = vmatprep.subr.mxu0 0.0
  %1159 = vmatpush1.msra.mxu0 %v321
  %1160 = vmatprep.subr.mxu0 0.0
  %1161 = vmatpush1.msra.mxu0 0.0
  %1162 = vmatprep.subr.mxu0 0.0
  %1163 = vmatpush1.msra.mxu0 0.0
  %1164 = vmatprep.subr.mxu0 0.0
  %1165 = vmatpush1.msra.mxu0 0.0
  %1166 = vmatprep.subr.mxu0 0.0
  %1167 = vmatpush1.msra.mxu0 0.0
  %1168 = vmatprep.subr.mxu0 0.0
  %1169 = vmatpush1.msra.mxu0 0.0
  %1170 = vmatprep.subr.mxu0 0.0
  %1171 = vmatpush1.msra.mxu0 0.0
  %1172 = vmatprep.subr.mxu0 0.0
  %1173 = vmatpush1.msra.mxu0 0.0
  %1174 = vmatprep.subr.mxu0 0.0
  %1175 = vmatpush1.msra.mxu0 0.0
  %1176 = vmatprep.subr.mxu0 0.0
  %1177 = vmatpush1.msra.mxu0 0.0
  %1178 = vmatprep.subr.mxu0 0.0
  %1179 = vmatpush1.msra.mxu0 0.0
  %1180 = vmatprep.subr.mxu0 0.0
  %1181 = vmatpush1.msra.mxu0 0.0
  %1182 = vmatprep.subr.mxu0 0.0
  %1183 = vmatpush1.msra.mxu0 0.0
  %1184 = vmatprep.subr.mxu0 0.0
  %1185 = vmatpush1.msra.mxu0 0.0
  %1186 = vmatprep.subr.mxu0 0.0
  %1187 = vmatpush1.msra.mxu0 0.0
  %1188 = vmatprep.subr.mxu0 0.0
  %1189 = vmatpush1.msra.mxu0 0.0
  %1190 = vmatprep.subr.mxu0 0.0
  %1191 = vmatpush1.msra.mxu0 0.0
  %1192 = vmatprep.subr.mxu0 0.0
  %1193 = vmatpush1.msra.mxu0 0.0
  %1194 = vmatprep.subr.mxu0 0.0
  %1195 = vmatpush1.msra.mxu0 0.0
  %1196 = vmatprep.subr.mxu0 0.0
  %1197 = vmatpush1.msra.mxu0 0.0
  %1198 = vmatprep.subr.mxu0 0.0
  %1199 = vmatpush1.msra.mxu0 0.0
  %1200 = vmatprep.subr.mxu0 0.0
  %1201 = vmatpush1.msra.mxu0 0.0
  %1202 = vmatprep.subr.mxu0 0.0
  %1203 = vmatpush1.msra.mxu0 0.0
  %1204 = vmatprep.subr.mxu0 0.0
  %1205 = vmatpush1.msra.mxu0 0.0
  %1206 = vmatprep.subr.mxu0 0.0
  %1207 = vmatpush1.msra.mxu0 0.0
  %1208 = vmatprep.subr.mxu0 0.0
  %1209 = vmatpush1.msra.mxu0 0.0
  %1210 = vmatprep.subr.mxu0 0.0
  %1211 = vmatpush1.msra.mxu0 0.0
  %1212 = vmatprep.subr.mxu0 0.0
  %1213 = vmatpush1.msra.mxu0 0.0
  %1214 = vmatprep.subr.mxu0 0.0
  %1215 = vmatpush1.msra.mxu0 0.0
  %1216 = vmatprep.mubr.f32.mxu0 0.0
  %1217 = vmatmul.mubr.f32.gmra.mrb[0].mxu0 %v1150
  %v1218 = vpop.f32.mrb[0].mxu0
  %v1219 = vadd.f32 0.0, %v1218
  %v1220 = vpop.f32.mrb[0].mxu0
  %1221 = vdwg.mxu0
  %v1223 = vsel %vm184, %v723, 0
  %1225 = vmatprep.subr.mxu0 0.0
  %1226 = vmatpush1.xpose.msra.mxu0 %v354
  %1227 = vmatprep.subr.mxu0 0.0
  %1228 = vmatpush1.xpose.msra.mxu0 %v357
  %1229 = vmatprep.subr.mxu0 0.0
  %1230 = vmatpush1.xpose.msra.mxu0 %v360
  %1231 = vmatprep.subr.mxu0 0.0
  %1232 = vmatpush1.xpose.msra.mxu0 %v363
  %1233 = vmatprep.subr.mxu0 0.0
  %1234 = vmatpush1.xpose.msra.mxu0 0.0
  %1235 = vmatprep.subr.mxu0 0.0
  %1236 = vmatpush1.xpose.msra.mxu0 0.0
  %1237 = vmatprep.subr.mxu0 0.0
  %1238 = vmatpush1.xpose.msra.mxu0 0.0
  %1239 = vmatprep.subr.mxu0 0.0
  %1240 = vmatpush1.xpose.msra.mxu0 0.0
  %1241 = vmatprep.subr.mxu0 0.0
  %1242 = vmatpush1.xpose.msra.mxu0 0.0
  %1243 = vmatprep.subr.mxu0 0.0
  %1244 = vmatpush1.xpose.msra.mxu0 0.0
  %1245 = vmatprep.subr.mxu0 0.0
  %1246 = vmatpush1.xpose.msra.mxu0 0.0
  %1247 = vmatprep.subr.mxu0 0.0
  %1248 = vmatpush1.xpose.msra.mxu0 0.0
  %1249 = vmatprep.subr.mxu0 0.0
  %1250 = vmatpush1.xpose.msra.mxu0 0.0
  %1251 = vmatprep.subr.mxu0 0.0
  %1252 = vmatpush1.xpose.msra.mxu0 0.0
  %1253 = vmatprep.subr.mxu0 0.0
  %1254 = vmatpush1.xpose.msra.mxu0 0.0
  %1255 = vmatprep.subr.mxu0 0.0
  %1256 = vmatpush1.xpose.msra.mxu0 0.0
  %1257 = vmatprep.subr.mxu0 0.0
  %1258 = vmatpush1.xpose.msra.mxu0 0.0
  %1259 = vmatprep.subr.mxu0 0.0
  %1260 = vmatpush1.xpose.msra.mxu0 0.0
  %1261 = vmatprep.subr.mxu0 0.0
  %1262 = vmatpush1.xpose.msra.mxu0 0.0
  %1263 = vmatprep.subr.mxu0 0.0
  %1264 = vmatpush1.xpose.msra.mxu0 0.0
  %1265 = vmatprep.subr.mxu0 0.0
  %1266 = vmatpush1.xpose.msra.mxu0 0.0
  %1267 = vmatprep.subr.mxu0 0.0
  %1268 = vmatpush1.xpose.msra.mxu0 0.0
  %1269 = vmatprep.subr.mxu0 0.0
  %1270 = vmatpush1.xpose.msra.mxu0 0.0
  %1271 = vmatprep.subr.mxu0 0.0
  %1272 = vmatpush1.xpose.msra.mxu0 0.0
  %1273 = vmatprep.subr.mxu0 0.0
  %1274 = vmatpush1.xpose.msra.mxu0 0.0
  %1275 = vmatprep.subr.mxu0 0.0
  %1276 = vmatpush1.xpose.msra.mxu0 0.0
  %1277 = vmatprep.subr.mxu0 0.0
  %1278 = vmatpush1.xpose.msra.mxu0 0.0
  %1279 = vmatprep.subr.mxu0 0.0
  %1280 = vmatpush1.xpose.msra.mxu0 0.0
  %1281 = vmatprep.subr.mxu0 0.0
  %1282 = vmatpush1.xpose.msra.mxu0 0.0
  %1283 = vmatprep.subr.mxu0 0.0
  %1284 = vmatpush1.xpose.msra.mxu0 0.0
  %1285 = vmatprep.subr.mxu0 0.0
  %1286 = vmatpush1.xpose.msra.mxu0 0.0
  %1287 = vmatprep.subr.mxu0 0.0
  %1288 = vmatpush1.xpose.msra.mxu0 0.0
  %1289 = vmatprep.mubr.f32.mxu0 0.0
  %1290 = vmatmul.mubr.f32.gmra.mrb[0].mxu0 %v1223
  %v1291 = vpop.f32.mrb[0].mxu0
  %v1292 = vadd.f32 0.0, %v1291
  %v1293 = vpop.f32.mrb[0].mxu0
  %1294 = vdwg.mxu0
  %v1295 = vmul.f32 %v1292, 0.17677669
  %v1296 = vsel %vm184, %v1295, -inf
  %1297 = vmax.xlane.f32.xlu0 %v1296
  %v1298 = vpop.xlane.xlu0 %1297
  %v1299 = vsub.f32 %v1295, %v1298
  %v1300 = vmul.f32 %v1299, 1.442695
  %v1301 = vpow.pop %v1300
  %v1302 = vsel %vm184, %v1301, 0.0
  %1303 = vadd.xlane.f32.xlu0 %v1302
  %v1304 = vpop.xlane.xlu0 %1303
  %v1305 = vrcp.pop %v1304
  %v1306 = vmul.f32 %v1301, %v1305
  %v1308 = vsel %vm184, %v1306, 0
  %1310 = vmatprep.subr.mxu0 0.0
  %1311 = vmatpush1.msra.mxu0 %v318
  %1312 = vmatprep.subr.mxu0 0.0
  %1313 = vmatpush1.msra.mxu0 %v319
  %1314 = vmatprep.subr.mxu0 0.0
  %1315 = vmatpush1.msra.mxu0 %v320
  %1316 = vmatprep.subr.mxu0 0.0
  %1317 = vmatpush1.msra.mxu0 %v321
  %1318 = vmatprep.subr.mxu0 0.0
  %1319 = vmatpush1.msra.mxu0 0.0
  %1320 = vmatprep.subr.mxu0 0.0
  %1321 = vmatpush1.msra.mxu0 0.0
  %1322 = vmatprep.subr.mxu0 0.0
  %1323 = vmatpush1.msra.mxu0 0.0
  %1324 = vmatprep.subr.mxu0 0.0
  %1325 = vmatpush1.msra.mxu0 0.0
  %1326 = vmatprep.subr.mxu0 0.0
  %1327 = vmatpush1.msra.mxu0 0.0
  %1328 = vmatprep.subr.mxu0 0.0
  %1329 = vmatpush1.msra.mxu0 0.0
  %1330 = vmatprep.subr.mxu0 0.0
  %1331 = vmatpush1.msra.mxu0 0.0
  %1332 = vmatprep.subr.mxu0 0.0
  %1333 = vmatpush1.msra.mxu0 0.0
  %1334 = vmatprep.subr.mxu0 0.0
  %1335 = vmatpush1.msra.mxu0 0.0
  %1336 = vmatprep.subr.mxu0 0.0
  %1337 = vmatpush1.msra.mxu0 0.0
  %1338 = vmatprep.subr.mxu0 0.0
  %1339 = vmatpush1.msra.mxu0 0.0
  %1340 = vmatprep.subr.mxu0 0.0
  %1341 = vmatpush1.msra.mxu0 0.0
  %1342 = vmatprep.subr.mxu0 0.0
  %1343 = vmatpush1.msra.mxu0 0.0
  %1344 = vmatprep.subr.mxu0 0.0
  %1345 = vmatpush1.msra.mxu0 0.0
  %1346 = vmatprep.subr.mxu0 0.0
  %1347 = vmatpush1.msra.mxu0 0.0
  %1348 = vmatprep.subr.mxu0 0.0
  %1349 = vmatpush1.msra.mxu0 0.0
  %1350 = vmatprep.subr.mxu0 0.0
  %1351 = vmatpush1.msra.mxu0 0.0
  %1352 = vmatprep.subr.mxu0 0.0
  %1353 = vmatpush1.msra.mxu0 0.0
  %1354 = vmatprep.subr.mxu0 0.0
  %1355 = vmatpush1.msra.mxu0 0.0
  %1356 = vmatprep.subr.mxu0 0.0
  %1357 = vmatpush1.msra.mxu0 0.0
  %1358 = vmatprep.subr.mxu0 0.0
  %1359 = vmatpush1.msra.mxu0 0.0
  %1360 = vmatprep.subr.mxu0 0.0
  %1361 = vmatpush1.msra.mxu0 0.0
  %1362 = vmatprep.subr.mxu0 0.0
  %1363 = vmatpush1.msra.mxu0 0.0
  %1364 = vmatprep.subr.mxu0 0.0
  %1365 = vmatpush1.msra.mxu0 0.0
  %1366 = vmatprep.subr.mxu0 0.0
  %1367 = vmatpush1.msra.mxu0 0.0
  %1368 = vmatprep.subr.mxu0 0.0
  %1369 = vmatpush1.msra.mxu0 0.0
  %1370 = vmatprep.subr.mxu0 0.0
  %1371 = vmatpush1.msra.mxu0 0.0
  %1372 = vmatprep.subr.mxu0 0.0
  %1373 = vmatpush1.msra.mxu0 0.0
  %1374 = vmatprep.mubr.f32.mxu0 0.0
  %1375 = vmatmul.mubr.f32.gmra.mrb[0].mxu0 %v1308
  %v1376 = vpop.f32.mrb[0].mxu0
  %v1377 = vadd.f32 0.0, %v1376
  %v1378 = vpop.f32.mrb[0].mxu0
  %1379 = vdwg.mxu0
  %v1380 = vlaneseq
  %v1381 = vshrl.u32 %v1380, 7
  %v1382 = vsub.s32 0, %v1381
  %v1383 = vrot.slane %v28, %v1382
  %v1385 = vsel %vm184, %v894, 0
  %v1388 = vsel %vm184, %v1219, 0
  %v1391 = vsel %vm184, %v1052, 0
  %v1394 = vsel %vm184, %v1377, 0
  %1396 = vmatprep.subr.mxu0 0.0
  %1397 = vmatpush1.msra.mxu0 %v24
  %1398 = vmatprep.subr.mxu0 0.0
  %1399 = vmatpush1.msra.mxu0 %v25
  %1400 = vmatprep.subr.mxu0 0.0
  %1401 = vmatpush1.msra.mxu0 %v26
  %1402 = vmatprep.subr.mxu0 0.0
  %1403 = vmatpush1.msra.mxu0 %v27
  %1404 = vmatprep.subr.mxu0 0.0
  %1405 = vmatpush1.msra.mxu0 0.0
  %1406 = vmatprep.subr.mxu0 0.0
  %1407 = vmatpush1.msra.mxu0 0.0
  %1408 = vmatprep.subr.mxu0 0.0
  %1409 = vmatpush1.msra.mxu0 0.0
  %1410 = vmatprep.subr.mxu0 0.0
  %1411 = vmatpush1.msra.mxu0 0.0
  %1412 = vmatprep.subr.mxu0 0.0
  %1413 = vmatpush1.msra.mxu0 0.0
  %1414 = vmatprep.subr.mxu0 0.0
  %1415 = vmatpush1.msra.mxu0 0.0
  %1416 = vmatprep.subr.mxu0 0.0
  %1417 = vmatpush1.msra.mxu0 0.0
  %1418 = vmatprep.subr.mxu0 0.0
  %1419 = vmatpush1.msra.mxu0 0.0
  %1420 = vmatprep.subr.mxu0 0.0
  %1421 = vmatpush1.msra.mxu0 0.0
  %1422 = vmatprep.subr.mxu0 0.0
  %1423 = vmatpush1.msra.mxu0 0.0
  %1424 = vmatprep.subr.mxu0 0.0
  %1425 = vmatpush1.msra.mxu0 0.0
  %1426 = vmatprep.subr.mxu0 0.0
  %1427 = vmatpush1.msra.mxu0 0.0
  %1428 = vmatprep.subr.mxu0 0.0
  %1429 = vmatpush1.msra.mxu0 0.0
  %1430 = vmatprep.subr.mxu0 0.0
  %1431 = vmatpush1.msra.mxu0 0.0
  %1432 = vmatprep.subr.mxu0 0.0
  %1433 = vmatpush1.msra.mxu0 0.0
  %1434 = vmatprep.subr.mxu0 0.0
  %1435 = vmatpush1.msra.mxu0 0.0
  %1436 = vmatprep.subr.mxu0 0.0
  %1437 = vmatpush1.msra.mxu0 0.0
  %1438 = vmatprep.subr.mxu0 0.0
  %1439 = vmatpush1.msra.mxu0 0.0
  %1440 = vmatprep.subr.mxu0 0.0
  %1441 = vmatpush1.msra.mxu0 0.0
  %1442 = vmatprep.subr.mxu0 0.0
  %1443 = vmatpush1.msra.mxu0 0.0
  %1444 = vmatprep.subr.mxu0 0.0
  %1445 = vmatpush1.msra.mxu0 0.0
  %1446 = vmatprep.subr.mxu0 0.0
  %1447 = vmatpush1.msra.mxu0 0.0
  %1448 = vmatprep.subr.mxu0 0.0
  %1449 = vmatpush1.msra.mxu0 0.0
  %1450 = vmatprep.subr.mxu0 0.0
  %1451 = vmatpush1.msra.mxu0 0.0
  %1452 = vmatprep.subr.mxu0 0.0
  %1453 = vmatpush1.msra.mxu0 0.0
  %1454 = vmatprep.subr.mxu0 0.0
  %1455 = vmatpush1.msra.mxu0 0.0
  %1456 = vmatprep.subr.mxu0 0.0
  %1457 = vmatpush1.msra.mxu0 0.0
  %1458 = vmatprep.subr.mxu0 0.0
  %1459 = vmatpush1.msra.mxu0 0.0
  %1460 = vmatprep.mubr.f32.mxu0 0.0
  %1461 = vmatmul.mubr.f32.gmra.mrb[0].mxu0 %v1385
  %v1462 = vpop.f32.mrb[0].mxu0
  %v1463 = vadd.f32 %v1383, %v1462
  %v1464 = vpop.f32.mrb[0].mxu0
  %1465 = vmatprep.mubr.f32.mxu0 0.0
  %1466 = vmatmul.mubr.f32.gmra.mrb[0].mxu0 %v1388
  %v1467 = vpop.f32.mrb[0].mxu0
  %v1468 = vadd.f32 %v1383, %v1467
  %v1469 = vpop.f32.mrb[0].mxu0
  %1470 = vmatprep.mubr.f32.mxu0 0.0
  %1471 = vmatmul.mubr.f32.gmra.mrb[0].mxu0 %v1391
  %v1472 = vpop.f32.mrb[0].mxu0
  %v1473 = vadd.f32 %v1383, %v1472
  %v1474 = vpop.f32.mrb[0].mxu0
  %1475 = vmatprep.mubr.f32.mxu0 0.0
  %1476 = vmatmul.mubr.f32.gmra.mrb[0].mxu0 %v1394
  %v1477 = vpop.f32.mrb[0].mxu0
  %v1478 = vadd.f32 %v1383, %v1477
  %v1479 = vpop.f32.mrb[0].mxu0
  %1480 = vdwg.mxu0
  %v1481 = vtanh.pop %v1463
  %v1482 = vtanh.pop %v1468
  %1485 = vrot.lane.b32.xlu0 %v1473, 112
  %v1486 = vpop.permute.xlu0 %1485
  %1487 = vrot.lane.b32.xlu0 %v1478, 112
  %v1488 = vpop.permute.xlu0 %1487
  %v1491 = vadd.f32 %v1463, %v1486
  %v1492 = vadd.f32 %v1468, %v1488
  %v1493 = vxor.u32 %v1491, 2147483648
  %v1494 = vxor.u32 %v1492, 2147483648
  %v1495 = vmul.f32 %v1493, 1.442695
  %v1496 = vpow.pop %v1495
  %v1497 = vmul.f32 %v1494, 1.442695
  %v1498 = vpow.pop %v1497
  %v1499 = vadd.f32 %v1496, 1.0
  %v1500 = vadd.f32 %v1498, 1.0
  %v1501 = vrcp.pop %v1499
  %v1502 = vmul.f32 1.0, %v1501
  %v1503 = vrcp.pop %v1500
  %v1504 = vmul.f32 1.0, %v1503
  %1505 = vrot.lane.b32.xlu0 %v1473, 80
  %v1506 = vpop.permute.xlu0 %1505
  %1507 = vrot.lane.b32.xlu0 %v1478, 80
  %v1508 = vpop.permute.xlu0 %1507
  %v1511 = vmul.f32 %v1502, %v1506
  %v1512 = vmul.f32 %v1504, %v1508
  %v1513 = vsub.f32 1.0, %v1502
  %v1514 = vsub.f32 1.0, %v1504
  %1517 = vrot.lane.b32.xlu0 %v1463, 96
  %v1518 = vpop.permute.xlu0 %1517
  %1519 = vrot.lane.b32.xlu0 %v1468, 96
  %v1520 = vpop.permute.xlu0 %1519
  %v1523 = vmul.f32 %v1513, %v1518
  %v1524 = vmul.f32 %v1514, %v1520
  %v1525 = vadd.f32 %v1511, %v1523
  %v1526 = vadd.f32 %v1512, %v1524
  %v1527 = vsel %vm644, %v1463, -inf
  %1528 = vmax.xlane.f32.xlu0 %v1527
  %v1529 = vpop.xlane.xlu0 %1528
  %v1530 = vsel %vm644, %v1468, -inf
  %1531 = vmax.xlane.f32.xlu0 %v1530
  %v1532 = vpop.xlane.xlu0 %1531
  %vm1533 = vcmp.eq.f32.partialorder %v1463, %v1529
  %vm1534 = vcmp.eq.f32.partialorder %v1468, %v1532
  %v1535 = vsel %vm1533, %v625, 16
  %v1536 = vsel %vm1534, %v625, 16
  %v1537 = vsel %vm644, %v1535, 2147483647
  %v1538 = vand.u32 %v1537, 65535
  %v1539 = vshra.s32 %v1537, 16
  %v1540 = vcvt.s32.f32 %v1538
  %v1541 = vcvt.s32.f32 %v1539
  %1542 = vmin.xlane.f32.xlu0 %v1541
  %v1543 = vpop.xlane.xlu0 %1542
  %vm1544 = vcmp.eq.f32.partialorder %v1541, %v1543
  %v1545 = vsel %vm1544, %v1540, inf
  %1546 = vmin.xlane.f32.xlu0 %v1545
  %v1547 = vpop.xlane.xlu0 %1546
  %v1548 = vcvt.f32.s32 %v1547
  %v1549 = vcvt.f32.s32 %v1543
  %v1550 = vshll.u32 %v1549, 16
  %v1551 = vadd.s32 %v1550, %v1548
  %v1552 = vsel %vm644, %v1536, 2147483647
  %v1553 = vand.u32 %v1552, 65535
  %v1554 = vshra.s32 %v1552, 16
  %v1555 = vcvt.s32.f32 %v1553
  %v1556 = vcvt.s32.f32 %v1554
  %1557 = vmin.xlane.f32.xlu0 %v1556
  %v1558 = vpop.xlane.xlu0 %1557
  %vm1559 = vcmp.eq.f32.partialorder %v1556, %v1558
  %v1560 = vsel %vm1559, %v1555, inf
  %1561 = vmin.xlane.f32.xlu0 %v1560
  %v1562 = vpop.xlane.xlu0 %1561
  %v1563 = vcvt.f32.s32 %v1562
  %v1564 = vcvt.f32.s32 %v1558
  %v1565 = vshll.u32 %v1564, 16
  %v1566 = vadd.s32 %v1565, %v1563
  %v1567 = vcvt.s32.f32 %v1551
  %v1568 = vcvt.s32.f32 %v1566
  %vm1569 = vcmp.eq.s32.totalorder %v625, 0
  %v1570 = vsel %vm1569, %v1567, 0.0
  %v1571 = vsel %vm1569, %v1568, 0.0
  %1574 = vrot.lane.b32.xlu0 %v1525, 32
  %v1575 = vpop.permute.xlu0 %1574
  %1576 = vrot.lane.b32.xlu0 %v1526, 32
  %v1577 = vpop.permute.xlu0 %1576
  %1582 = vrot.lane.b32.xlu0 %v1481, 112
  %v1583 = vpop.permute.xlu0 %1582
  %1584 = vrot.lane.b32.xlu0 %v1482, 112
  %v1585 = vpop.permute.xlu0 %1584
  %1590 = vrot.lane.b32.xlu0 %v1570, 80
  %v1591 = vpop.permute.xlu0 %1590
  %1592 = vrot.lane.b32.xlu0 %v1571, 80
  %v1593 = vpop.permute.xlu0 %1592
  %v1596 = vsel %vm644, %v1575, %v1583
  %v1597 = vsel %vm644, %v1577, %v1585
  %vm1598 = vcmask 654336
  %v1599 = vsel %vm1598, %v1596, %v1591
  %v1600 = vsel %vm1598, %v1597, %v1593
  %1601 = vst [vmem:[%s3] sm:$0xff] %v1599
  %1602 = vst [vmem:[%s3 + $0x8] sm:$0xff] %v1600
  // Predicated region
  $region14: #{forward.1} parent=0 // pred_check
    _
  $region15: #{forward.1} parent=0 // pred_check_branch
    %1604 = sbr.rel (0) target = $region17
  $region16: #{forward.1} parent=0 // pred_region
    _
  $region17: #{forward.1} parent=0 // pred_fallthru
    _
  // Predicated region
  $region18: #{forward.1} parent=0 // pred_check
    _
  $region19: #{forward.1} parent=0 // pred_check_branch
    %1606 = sbr.rel (0) target = $region21
  $region20: #{forward.1} parent=0 // pred_region
    _
  $region21: #{forward.1} parent=0 // pred_fallthru
    _

</llo_original>
